<compile_context>
chip_gen: v7x
topology: tpu7x:2x2x1
jax: 0.10.0
libtpu: 0.0.40
codegen_flags: <defaults>
</compile_context>

<pallas_src>
import jax
import jax.numpy as jnp
from jax import lax
from jax.experimental import pallas as pl
from jax.experimental.pallas import tpu as pltpu

H = 10     # hidden size
OUT = 2    # fc output features


def lstm_stack_kernel(x_ref, wih0_ref, whh0_ref, b0_ref,
                      wih1_ref, whh1_ref, b1_ref,
                      wfc_ref, bfc_ref, out_ref, xp_ref):
    T, B = x_ref.shape
    G = 4 * H

    # ---- hoisted work (runs once, outside the serial recurrence) -------------
    # Layer-0 input projection: input_size == 1, so xt @ Wih0 is a broadcast
    # multiply. Do all T steps at once on the VPU and fold in the layer-0 bias.
    x = x_ref[...].astype(jnp.float32)                      # (T, B)
    xp_ref[...] = (x[:, :, None] * wih0_ref[...][None, :, :]
                   + b0_ref[...][None, :, :])               # (T, B, 4H)

    # Fused weights, loaded once and reused for all T steps.
    whh0 = whh0_ref[...]                                    # (H, 4H)
    wih1 = wih1_ref[...]                                    # (H, 4H)
    whh1 = whh1_ref[...]                                    # (H, 4H)
    # Hoisted layer-1 bias broadcast (loop-invariant).
    b1b = jnp.broadcast_to(b1_ref[...], (B, G))             # (B, 4H)

    def cell(gates, c):
        # gates: (B, 4H) pre-activation, gate order (i, f, o, g).
        s = jax.nn.sigmoid(gates[:, :3 * H])                # one EUP pass (i,f,o)
        g = jnp.tanh(gates[:, 3 * H:])                      # one EUP pass (g)
        i = s[:, :H]
        f = s[:, H:2 * H]
        o = s[:, 2 * H:]
        c_new = f * c + i * g
        h_new = o * jnp.tanh(c_new)
        return h_new, c_new

    def step(t, carry):
        h0, c0, h1, c1 = carry
        # layer 0: input projection already precomputed -> 1 MXU dot
        g0 = xp_ref[t] + jnp.dot(h0, whh0, preferred_element_type=jnp.float32)
        h0, c0 = cell(g0, c0)
        # layer 1: 2 MXU dots
        g1 = (jnp.dot(h0, wih1, preferred_element_type=jnp.float32)
              + jnp.dot(h1, whh1, preferred_element_type=jnp.float32)
              + b1b)
        h1, c1 = cell(g1, c1)
        return (h0, c0, h1, c1)

    init = tuple(jnp.zeros((B, H), jnp.float32) for _ in range(4))
    # T is small and static: fully unroll so the LLO scheduler can overlap
    # layer 1 of step t with layer 0 of step t+1 and hide MXU/EUP FIFO latency.
    _, _, h1, _ = lax.fori_loop(0, T, step, init, unroll=True)

    # fc: (B, 10) @ (10, 2) + (1, 2)
    out_ref[...] = (jnp.dot(h1, wfc_ref[...], preferred_element_type=jnp.float32)
                    + bfc_ref[...])


def lstm0_forward(x, fused):
    """x: (B, T) -> (B, 2), matching lstm0.forward for B > 1."""
    B, T = x.shape
    x_tm = jnp.asarray(x, jnp.float32).T                    # time-major (T, B)

    args = (x_tm,
            fused['wih0'], fused['whh0'], fused['b0'],
            fused['wih1'], fused['whh1'], fused['b1'],
            fused['wfc'], fused['bfc'])
    vmem = pl.BlockSpec(memory_space=pltpu.MemorySpace.VMEM)

    # TODO(synk): for large B on v7x, add a parallel grid over batch tiles to
    # use both TensorCores; unnecessary at these sizes.
    return pl.pallas_call(
        lstm_stack_kernel,
        out_shape=jax.ShapeDtypeStruct((B, OUT), jnp.float32),
        in_specs=[vmem] * len(args),
        out_specs=vmem,
        scratch_shapes=[pltpu.VMEM((T, B, 4 * H), jnp.float32)],
    )(*args)


def init_params(key):
    """Deterministic init matching the PyTorch shapes (uniform +-1/sqrt(H)).

    Returns (raw, fused):
      raw   = PyTorch-layout weights (gate order i,f,g,o) for the reference.
      fused = kernel layout: per-layer concatenated (in, 4H) weights and
              (1, 4H) biases in gate order (i, f, o, g); fc as (H, OUT)/(1, OUT).
    """
    def u(k, shape, fan):
        bound = 1.0 / jnp.sqrt(jnp.float32(fan))
        return jax.random.uniform(k, shape, jnp.float32, -bound, bound)

    ks = jax.random.split(key, 10)
    raw = dict(
        wih0=u(ks[0], (4 * H, 1), H), whh0=u(ks[1], (4 * H, H), H),
        bih0=u(ks[2], (4 * H,), H),   bhh0=u(ks[3], (4 * H,), H),
        wih1=u(ks[4], (4 * H, H), H), whh1=u(ks[5], (4 * H, H), H),
        bih1=u(ks[6], (4 * H,), H),   bhh1=u(ks[7], (4 * H,), H),
        wfc=u(ks[8], (OUT, H), H),    bfc=u(ks[9], (OUT,), H),
    )

    perm = jnp.array([0, 1, 3, 2])   # PyTorch (i,f,g,o) -> kernel (i,f,o,g)

    def cat_w(w, in_dim):
        # (4H, in) -> (in, 4H): split per gate, reorder, transpose for x @ W.
        wg = w.reshape(4, H, in_dim)[perm]
        return jnp.transpose(wg, (2, 0, 1)).reshape(in_dim, 4 * H)

    def cat_b(bih, bhh):
        return (bih + bhh).reshape(4, H)[perm].reshape(1, 4 * H)

    fused = dict(
        wih0=cat_w(raw['wih0'], 1), whh0=cat_w(raw['whh0'], H),
        b0=cat_b(raw['bih0'], raw['bhh0']),
        wih1=cat_w(raw['wih1'], H), whh1=cat_w(raw['whh1'], H),
        b1=cat_b(raw['bih1'], raw['bhh1']),
        wfc=raw['wfc'].T, bfc=raw['bfc'].reshape(1, OUT),
    )
    return raw, fused


def ref_forward(x, raw):
    """Pure-JAX reference in canonical PyTorch layout (validates the fusion too)."""
    x = jnp.asarray(x, jnp.float32)
    B, T = x.shape

    def cell(xt, h, c, wih, whh, bih, bhh):
        gates = xt @ wih.T + h @ whh.T + bih + bhh           # (B, 4H), (i,f,g,o)
        i = jax.nn.sigmoid(gates[:, 0 * H:1 * H])
        f = jax.nn.sigmoid(gates[:, 1 * H:2 * H])
        g = jnp.tanh(gates[:, 2 * H:3 * H])
        o = jax.nn.sigmoid(gates[:, 3 * H:4 * H])
        c = f * c + i * g
        h = o * jnp.tanh(c)
        return h, c

    def step(carry, xt):
        h0, c0, h1, c1 = carry
        h0, c0 = cell(xt.reshape(B, 1), h0, c0,
                      raw['wih0'], raw['whh0'], raw['bih0'], raw['bhh0'])
        h1, c1 = cell(h0, h1, c1,
                      raw['wih1'], raw['whh1'], raw['bih1'], raw['bhh1'])
        return (h0, c0, h1, c1), None

    init = tuple(jnp.zeros((B, H), jnp.float32) for _ in range(4))
    (_, _, h1, _), _ = lax.scan(step, init, x.T)
    return h1 @ raw['wfc'].T + raw['bfc']


if __name__ == "__main__":
    key = jax.random.PRNGKey(0)
    k_x, k_p = jax.random.split(key)

    B, T = 2, 8                       # batch=2, seq=8 (input to forward is (B, T))
    x = jax.random.normal(k_x, (B, T), jnp.float32)
    raw, fused = init_params(k_p)

    out = lstm0_forward(x, fused)
    out = jax.block_until_ready(out)

    ref = ref_forward(x, raw)
    assert out.shape == (B, OUT)
    assert jnp.allclose(out, ref, atol=1e-5, rtol=1e-5), (out, ref)

    print("KERNEL_OK")
</pallas_src>

<mosaic_0001>
module attributes {stable_mosaic.version = 11 : i64} {
  func.func @lstm_stack_kernel(%arg0: memref<8x2xf32, #tpu.memory_space<vmem>>, %arg1: memref<1x40xf32, #tpu.memory_space<vmem>>, %arg2: memref<10x40xf32, #tpu.memory_space<vmem>>, %arg3: memref<1x40xf32, #tpu.memory_space<vmem>>, %arg4: memref<10x40xf32, #tpu.memory_space<vmem>>, %arg5: memref<10x40xf32, #tpu.memory_space<vmem>>, %arg6: memref<1x40xf32, #tpu.memory_space<vmem>>, %arg7: memref<10x2xf32, #tpu.memory_space<vmem>>, %arg8: memref<1x2xf32, #tpu.memory_space<vmem>>, %arg9: memref<2x2xf32, #tpu.memory_space<vmem>>, %arg10: memref<8x2x40xf32, #tpu.memory_space<vmem>>) attributes {dimension_semantics = [], scalar_prefetch = 0 : i64, scratch_operands = 1 : i64, tpu.core_type = #tpu.core_type<tc>} {
    %c0 = arith.constant 0 : index
    %c0_0 = arith.constant 0 : index
    %0 = vector.load %arg0[%c0, %c0_0] : memref<8x2xf32, #tpu.memory_space<vmem>>, vector<8x2xf32>
    %1 = vector.shape_cast %0 : vector<8x2xf32> to vector<8x2x1xf32>
    %c0_1 = arith.constant 0 : index
    %c0_2 = arith.constant 0 : index
    %2 = vector.load %arg1[%c0_1, %c0_2] : memref<1x40xf32, #tpu.memory_space<vmem>>, vector<1x40xf32>
    %3 = vector.shape_cast %2 : vector<1x40xf32> to vector<1x1x40xf32>
    %4 = vector.broadcast %1 : vector<8x2x1xf32> to vector<8x2x40xf32>
    %5 = vector.broadcast %3 : vector<1x1x40xf32> to vector<8x2x40xf32>
    %6 = arith.mulf %4, %5 : vector<8x2x40xf32>
    %c0_3 = arith.constant 0 : index
    %c0_4 = arith.constant 0 : index
    %7 = vector.load %arg3[%c0_3, %c0_4] : memref<1x40xf32, #tpu.memory_space<vmem>>, vector<1x40xf32>
    %8 = vector.shape_cast %7 : vector<1x40xf32> to vector<1x1x40xf32>
    %9 = vector.broadcast %8 : vector<1x1x40xf32> to vector<8x2x40xf32>
    %10 = arith.addf %6, %9 : vector<8x2x40xf32>
    %c0_5 = arith.constant 0 : index
    %c0_6 = arith.constant 0 : index
    %c0_7 = arith.constant 0 : index
    %11 = vector.load %arg10[%c0_5, %c0_6, %c0_7] : memref<8x2x40xf32, #tpu.memory_space<vmem>>, vector<8x2x40xf32>
    tpu.vector_store %arg10[%c0_5, %c0_6, %c0_7], %10 {strides = array<i32>} : memref<8x2x40xf32, #tpu.memory_space<vmem>>, vector<8x2x40xf32>,
    %c0_8 = arith.constant 0 : index
    %c0_9 = arith.constant 0 : index
    %12 = vector.load %arg2[%c0_8, %c0_9] : memref<10x40xf32, #tpu.memory_space<vmem>>, vector<10x40xf32>
    %c0_10 = arith.constant 0 : index
    %c0_11 = arith.constant 0 : index
    %13 = vector.load %arg4[%c0_10, %c0_11] : memref<10x40xf32, #tpu.memory_space<vmem>>, vector<10x40xf32>
    %c0_12 = arith.constant 0 : index
    %c0_13 = arith.constant 0 : index
    %14 = vector.load %arg5[%c0_12, %c0_13] : memref<10x40xf32, #tpu.memory_space<vmem>>, vector<10x40xf32>
    %c0_14 = arith.constant 0 : index
    %c0_15 = arith.constant 0 : index
    %15 = vector.load %arg6[%c0_14, %c0_15] : memref<1x40xf32, #tpu.memory_space<vmem>>, vector<1x40xf32>
    %16 = vector.shape_cast %15 : vector<1x40xf32> to vector<1x40xf32>
    %17 = vector.broadcast %16 : vector<1x40xf32> to vector<2x40xf32>
    %cst = arith.constant 0.000000e+00 : f32
    %18 = vector.broadcast %cst : f32 to vector<2x10xf32>
    %cst_16 = arith.constant 0.000000e+00 : f32
    %19 = vector.broadcast %cst_16 : f32 to vector<2x10xf32>
    %cst_17 = arith.constant 0.000000e+00 : f32
    %20 = vector.broadcast %cst_17 : f32 to vector<2x10xf32>
    %cst_18 = arith.constant 0.000000e+00 : f32
    %21 = vector.broadcast %cst_18 : f32 to vector<2x10xf32>
    %c0_i32 = arith.constant 0 : i32
    %22 = arith.index_cast %c0_i32 : i32 to index
    %c0_19 = arith.constant 0 : index
    %c0_20 = arith.constant 0 : index
    %23 = vector.load %arg10[%22, %c0_19, %c0_20] : memref<8x2x40xf32, #tpu.memory_space<vmem>>, vector<1x2x40xf32>
    %24 = vector.shape_cast %23 : vector<1x2x40xf32> to vector<2x40xf32>
    %cst_21 = arith.constant dense<0.000000e+00> : vector<2x40xf32>
    %25 = tpu.matmul %18, %12, %cst_21 {dimension_numbers = #tpu.dot_dimension_numbers<[1], [0], [0], [1], [0, 0, 1, 1], [], []>} : vector<2x10xf32>, vector<10x40xf32>, vector<2x40xf32> -> vector<2x40xf32>
    %26 = arith.addf %24, %25 : vector<2x40xf32>
    %27 = vector.extract_strided_slice %26 {offsets = [0, 0], sizes = [2, 30], strides = [1, 1]} : vector<2x40xf32> to vector<2x30xf32>
    %28 = arith.negf %27 : vector<2x30xf32>
    %29 = math.exp %28 : vector<2x30xf32>
    %cst_22 = arith.constant 1.000000e+00 : f32
    %30 = vector.broadcast %cst_22 : f32 to vector<2x30xf32>
    %31 = arith.addf %30, %29 : vector<2x30xf32>
    %32 = arith.divf %30, %31 : vector<2x30xf32>
    %33 = vector.extract_strided_slice %26 {offsets = [0, 30], sizes = [2, 10], strides = [1, 1]} : vector<2x40xf32> to vector<2x10xf32>
    %34 = math.tanh %33 : vector<2x10xf32>
    %35 = vector.extract_strided_slice %32 {offsets = [0, 0], sizes = [2, 10], strides = [1, 1]} : vector<2x30xf32> to vector<2x10xf32>
    %36 = vector.extract_strided_slice %32 {offsets = [0, 10], sizes = [2, 10], strides = [1, 1]} : vector<2x30xf32> to vector<2x10xf32>
    %37 = vector.extract_strided_slice %32 {offsets = [0, 20], sizes = [2, 10], strides = [1, 1]} : vector<2x30xf32> to vector<2x10xf32>
    %38 = arith.mulf %36, %19 : vector<2x10xf32>
    %39 = arith.mulf %35, %34 : vector<2x10xf32>
    %40 = arith.addf %38, %39 : vector<2x10xf32>
    %41 = math.tanh %40 : vector<2x10xf32>
    %42 = arith.mulf %37, %41 : vector<2x10xf32>
    %cst_23 = arith.constant dense<0.000000e+00> : vector<2x40xf32>
    %43 = tpu.matmul %42, %13, %cst_23 {dimension_numbers = #tpu.dot_dimension_numbers<[1], [0], [0], [1], [0, 0, 1, 1], [], []>} : vector<2x10xf32>, vector<10x40xf32>, vector<2x40xf32> -> vector<2x40xf32>
    %cst_24 = arith.constant dense<0.000000e+00> : vector<2x40xf32>
    %44 = tpu.matmul %20, %14, %cst_24 {dimension_numbers = #tpu.dot_dimension_numbers<[1], [0], [0], [1], [0, 0, 1, 1], [], []>} : vector<2x10xf32>, vector<10x40xf32>, vector<2x40xf32> -> vector<2x40xf32>
    %45 = arith.addf %43, %44 : vector<2x40xf32>
    %46 = arith.addf %45, %17 : vector<2x40xf32>
    %47 = vector.extract_strided_slice %46 {offsets = [0, 0], sizes = [2, 30], strides = [1, 1]} : vector<2x40xf32> to vector<2x30xf32>
    %48 = arith.negf %47 : vector<2x30xf32>
    %49 = math.exp %48 : vector<2x30xf32>
    %cst_25 = arith.constant 1.000000e+00 : f32
    %50 = vector.broadcast %cst_25 : f32 to vector<2x30xf32>
    %51 = arith.addf %50, %49 : vector<2x30xf32>
    %52 = arith.divf %50, %51 : vector<2x30xf32>
    %53 = vector.extract_strided_slice %46 {offsets = [0, 30], sizes = [2, 10], strides = [1, 1]} : vector<2x40xf32> to vector<2x10xf32>
    %54 = math.tanh %53 : vector<2x10xf32>
    %55 = vector.extract_strided_slice %52 {offsets = [0, 0], sizes = [2, 10], strides = [1, 1]} : vector<2x30xf32> to vector<2x10xf32>
    %56 = vector.extract_strided_slice %52 {offsets = [0, 10], sizes = [2, 10], strides = [1, 1]} : vector<2x30xf32> to vector<2x10xf32>
    %57 = vector.extract_strided_slice %52 {offsets = [0, 20], sizes = [2, 10], strides = [1, 1]} : vector<2x30xf32> to vector<2x10xf32>
    %58 = arith.mulf %56, %21 : vector<2x10xf32>
    %59 = arith.mulf %55, %54 : vector<2x10xf32>
    %60 = arith.addf %58, %59 : vector<2x10xf32>
    %61 = math.tanh %60 : vector<2x10xf32>
    %62 = arith.mulf %57, %61 : vector<2x10xf32>
    %c1_i32 = arith.constant 1 : i32
    %63 = arith.index_cast %c1_i32 : i32 to index
    %c0_26 = arith.constant 0 : index
    %c0_27 = arith.constant 0 : index
    %64 = vector.load %arg10[%63, %c0_26, %c0_27] : memref<8x2x40xf32, #tpu.memory_space<vmem>>, vector<1x2x40xf32>
    %65 = vector.shape_cast %64 : vector<1x2x40xf32> to vector<2x40xf32>
    %cst_28 = arith.constant dense<0.000000e+00> : vector<2x40xf32>
    %66 = tpu.matmul %42, %12, %cst_28 {dimension_numbers = #tpu.dot_dimension_numbers<[1], [0], [0], [1], [0, 0, 1, 1], [], []>} : vector<2x10xf32>, vector<10x40xf32>, vector<2x40xf32> -> vector<2x40xf32>
    %67 = arith.addf %65, %66 : vector<2x40xf32>
    %68 = vector.extract_strided_slice %67 {offsets = [0, 0], sizes = [2, 30], strides = [1, 1]} : vector<2x40xf32> to vector<2x30xf32>
    %69 = arith.negf %68 : vector<2x30xf32>
    %70 = math.exp %69 : vector<2x30xf32>
    %cst_29 = arith.constant 1.000000e+00 : f32
    %71 = vector.broadcast %cst_29 : f32 to vector<2x30xf32>
    %72 = arith.addf %71, %70 : vector<2x30xf32>
    %73 = arith.divf %71, %72 : vector<2x30xf32>
    %74 = vector.extract_strided_slice %67 {offsets = [0, 30], sizes = [2, 10], strides = [1, 1]} : vector<2x40xf32> to vector<2x10xf32>
    %75 = math.tanh %74 : vector<2x10xf32>
    %76 = vector.extract_strided_slice %73 {offsets = [0, 0], sizes = [2, 10], strides = [1, 1]} : vector<2x30xf32> to vector<2x10xf32>
    %77 = vector.extract_strided_slice %73 {offsets = [0, 10], sizes = [2, 10], strides = [1, 1]} : vector<2x30xf32> to vector<2x10xf32>
    %78 = vector.extract_strided_slice %73 {offsets = [0, 20], sizes = [2, 10], strides = [1, 1]} : vector<2x30xf32> to vector<2x10xf32>
    %79 = arith.mulf %77, %40 : vector<2x10xf32>
    %80 = arith.mulf %76, %75 : vector<2x10xf32>
    %81 = arith.addf %79, %80 : vector<2x10xf32>
    %82 = math.tanh %81 : vector<2x10xf32>
    %83 = arith.mulf %78, %82 : vector<2x10xf32>
    %cst_30 = arith.constant dense<0.000000e+00> : vector<2x40xf32>
    %84 = tpu.matmul %83, %13, %cst_30 {dimension_numbers = #tpu.dot_dimension_numbers<[1], [0], [0], [1], [0, 0, 1, 1], [], []>} : vector<2x10xf32>, vector<10x40xf32>, vector<2x40xf32> -> vector<2x40xf32>
    %cst_31 = arith.constant dense<0.000000e+00> : vector<2x40xf32>
    %85 = tpu.matmul %62, %14, %cst_31 {dimension_numbers = #tpu.dot_dimension_numbers<[1], [0], [0], [1], [0, 0, 1, 1], [], []>} : vector<2x10xf32>, vector<10x40xf32>, vector<2x40xf32> -> vector<2x40xf32>
    %86 = arith.addf %84, %85 : vector<2x40xf32>
    %87 = arith.addf %86, %17 : vector<2x40xf32>
    %88 = vector.extract_strided_slice %87 {offsets = [0, 0], sizes = [2, 30], strides = [1, 1]} : vector<2x40xf32> to vector<2x30xf32>
    %89 = arith.negf %88 : vector<2x30xf32>
    %90 = math.exp %89 : vector<2x30xf32>
    %cst_32 = arith.constant 1.000000e+00 : f32
    %91 = vector.broadcast %cst_32 : f32 to vector<2x30xf32>
    %92 = arith.addf %91, %90 : vector<2x30xf32>
    %93 = arith.divf %91, %92 : vector<2x30xf32>
    %94 = vector.extract_strided_slice %87 {offsets = [0, 30], sizes = [2, 10], strides = [1, 1]} : vector<2x40xf32> to vector<2x10xf32>
    %95 = math.tanh %94 : vector<2x10xf32>
    %96 = vector.extract_strided_slice %93 {offsets = [0, 0], sizes = [2, 10], strides = [1, 1]} : vector<2x30xf32> to vector<2x10xf32>
    %97 = vector.extract_strided_slice %93 {offsets = [0, 10], sizes = [2, 10], strides = [1, 1]} : vector<2x30xf32> to vector<2x10xf32>
    %98 = vector.extract_strided_slice %93 {offsets = [0, 20], sizes = [2, 10], strides = [1, 1]} : vector<2x30xf32> to vector<2x10xf32>
    %99 = arith.mulf %97, %60 : vector<2x10xf32>
    %100 = arith.mulf %96, %95 : vector<2x10xf32>
    %101 = arith.addf %99, %100 : vector<2x10xf32>
    %102 = math.tanh %101 : vector<2x10xf32>
    %103 = arith.mulf %98, %102 : vector<2x10xf32>
    %c2_i32 = arith.constant 2 : i32
    %104 = arith.index_cast %c2_i32 : i32 to index
    %c0_33 = arith.constant 0 : index
    %c0_34 = arith.constant 0 : index
    %105 = vector.load %arg10[%104, %c0_33, %c0_34] : memref<8x2x40xf32, #tpu.memory_space<vmem>>, vector<1x2x40xf32>
    %106 = vector.shape_cast %105 : vector<1x2x40xf32> to vector<2x40xf32>
    %cst_35 = arith.constant dense<0.000000e+00> : vector<2x40xf32>
    %107 = tpu.matmul %83, %12, %cst_35 {dimension_numbers = #tpu.dot_dimension_numbers<[1], [0], [0], [1], [0, 0, 1, 1], [], []>} : vector<2x10xf32>, vector<10x40xf32>, vector<2x40xf32> -> vector<2x40xf32>
    %108 = arith.addf %106, %107 : vector<2x40xf32>
    %109 = vector.extract_strided_slice %108 {offsets = [0, 0], sizes = [2, 30], strides = [1, 1]} : vector<2x40xf32> to vector<2x30xf32>
    %110 = arith.negf %109 : vector<2x30xf32>
    %111 = math.exp %110 : vector<2x30xf32>
    %cst_36 = arith.constant 1.000000e+00 : f32
    %112 = vector.broadcast %cst_36 : f32 to vector<2x30xf32>
    %113 = arith.addf %112, %111 : vector<2x30xf32>
    %114 = arith.divf %112, %113 : vector<2x30xf32>
    %115 = vector.extract_strided_slice %108 {offsets = [0, 30], sizes = [2, 10], strides = [1, 1]} : vector<2x40xf32> to vector<2x10xf32>
    %116 = math.tanh %115 : vector<2x10xf32>
    %117 = vector.extract_strided_slice %114 {offsets = [0, 0], sizes = [2, 10], strides = [1, 1]} : vector<2x30xf32> to vector<2x10xf32>
    %118 = vector.extract_strided_slice %114 {offsets = [0, 10], sizes = [2, 10], strides = [1, 1]} : vector<2x30xf32> to vector<2x10xf32>
    %119 = vector.extract_strided_slice %114 {offsets = [0, 20], sizes = [2, 10], strides = [1, 1]} : vector<2x30xf32> to vector<2x10xf32>
    %120 = arith.mulf %118, %81 : vector<2x10xf32>
    %121 = arith.mulf %117, %116 : vector<2x10xf32>
    %122 = arith.addf %120, %121 : vector<2x10xf32>
    %123 = math.tanh %122 : vector<2x10xf32>
    %124 = arith.mulf %119, %123 : vector<2x10xf32>
    %cst_37 = arith.constant dense<0.000000e+00> : vector<2x40xf32>
    %125 = tpu.matmul %124, %13, %cst_37 {dimension_numbers = #tpu.dot_dimension_numbers<[1], [0], [0], [1], [0, 0, 1, 1], [], []>} : vector<2x10xf32>, vector<10x40xf32>, vector<2x40xf32> -> vector<2x40xf32>
    %cst_38 = arith.constant dense<0.000000e+00> : vector<2x40xf32>
    %126 = tpu.matmul %103, %14, %cst_38 {dimension_numbers = #tpu.dot_dimension_numbers<[1], [0], [0], [1], [0, 0, 1, 1], [], []>} : vector<2x10xf32>, vector<10x40xf32>, vector<2x40xf32> -> vector<2x40xf32>
    %127 = arith.addf %125, %126 : vector<2x40xf32>
    %128 = arith.addf %127, %17 : vector<2x40xf32>
    %129 = vector.extract_strided_slice %128 {offsets = [0, 0], sizes = [2, 30], strides = [1, 1]} : vector<2x40xf32> to vector<2x30xf32>
    %130 = arith.negf %129 : vector<2x30xf32>
    %131 = math.exp %130 : vector<2x30xf32>
    %cst_39 = arith.constant 1.000000e+00 : f32
    %132 = vector.broadcast %cst_39 : f32 to vector<2x30xf32>
    %133 = arith.addf %132, %131 : vector<2x30xf32>
    %134 = arith.divf %132, %133 : vector<2x30xf32>
    %135 = vector.extract_strided_slice %128 {offsets = [0, 30], sizes = [2, 10], strides = [1, 1]} : vector<2x40xf32> to vector<2x10xf32>
    %136 = math.tanh %135 : vector<2x10xf32>
    %137 = vector.extract_strided_slice %134 {offsets = [0, 0], sizes = [2, 10], strides = [1, 1]} : vector<2x30xf32> to vector<2x10xf32>
    %138 = vector.extract_strided_slice %134 {offsets = [0, 10], sizes = [2, 10], strides = [1, 1]} : vector<2x30xf32> to vector<2x10xf32>
    %139 = vector.extract_strided_slice %134 {offsets = [0, 20], sizes = [2, 10], strides = [1, 1]} : vector<2x30xf32> to vector<2x10xf32>
    %140 = arith.mulf %138, %101 : vector<2x10xf32>
    %141 = arith.mulf %137, %136 : vector<2x10xf32>
    %142 = arith.addf %140, %141 : vector<2x10xf32>
    %143 = math.tanh %142 : vector<2x10xf32>
    %144 = arith.mulf %139, %143 : vector<2x10xf32>
    %c3_i32 = arith.constant 3 : i32
    %145 = arith.index_cast %c3_i32 : i32 to index
    %c0_40 = arith.constant 0 : index
    %c0_41 = arith.constant 0 : index
    %146 = vector.load %arg10[%145, %c0_40, %c0_41] : memref<8x2x40xf32, #tpu.memory_space<vmem>>, vector<1x2x40xf32>
    %147 = vector.shape_cast %146 : vector<1x2x40xf32> to vector<2x40xf32>
    %cst_42 = arith.constant dense<0.000000e+00> : vector<2x40xf32>
    %148 = tpu.matmul %124, %12, %cst_42 {dimension_numbers = #tpu.dot_dimension_numbers<[1], [0], [0], [1], [0, 0, 1, 1], [], []>} : vector<2x10xf32>, vector<10x40xf32>, vector<2x40xf32> -> vector<2x40xf32>
    %149 = arith.addf %147, %148 : vector<2x40xf32>
    %150 = vector.extract_strided_slice %149 {offsets = [0, 0], sizes = [2, 30], strides = [1, 1]} : vector<2x40xf32> to vector<2x30xf32>
    %151 = arith.negf %150 : vector<2x30xf32>
    %152 = math.exp %151 : vector<2x30xf32>
    %cst_43 = arith.constant 1.000000e+00 : f32
    %153 = vector.broadcast %cst_43 : f32 to vector<2x30xf32>
    %154 = arith.addf %153, %152 : vector<2x30xf32>
    %155 = arith.divf %153, %154 : vector<2x30xf32>
    %156 = vector.extract_strided_slice %149 {offsets = [0, 30], sizes = [2, 10], strides = [1, 1]} : vector<2x40xf32> to vector<2x10xf32>
    %157 = math.tanh %156 : vector<2x10xf32>
    %158 = vector.extract_strided_slice %155 {offsets = [0, 0], sizes = [2, 10], strides = [1, 1]} : vector<2x30xf32> to vector<2x10xf32>
    %159 = vector.extract_strided_slice %155 {offsets = [0, 10], sizes = [2, 10], strides = [1, 1]} : vector<2x30xf32> to vector<2x10xf32>
    %160 = vector.extract_strided_slice %155 {offsets = [0, 20], sizes = [2, 10], strides = [1, 1]} : vector<2x30xf32> to vector<2x10xf32>
    %161 = arith.mulf %159, %122 : vector<2x10xf32>
    %162 = arith.mulf %158, %157 : vector<2x10xf32>
    %163 = arith.addf %161, %162 : vector<2x10xf32>
    %164 = math.tanh %163 : vector<2x10xf32>
    %165 = arith.mulf %160, %164 : vector<2x10xf32>
    %cst_44 = arith.constant dense<0.000000e+00> : vector<2x40xf32>
    %166 = tpu.matmul %165, %13, %cst_44 {dimension_numbers = #tpu.dot_dimension_numbers<[1], [0], [0], [1], [0, 0, 1, 1], [], []>} : vector<2x10xf32>, vector<10x40xf32>, vector<2x40xf32> -> vector<2x40xf32>
    %cst_45 = arith.constant dense<0.000000e+00> : vector<2x40xf32>
    %167 = tpu.matmul %144, %14, %cst_45 {dimension_numbers = #tpu.dot_dimension_numbers<[1], [0], [0], [1], [0, 0, 1, 1], [], []>} : vector<2x10xf32>, vector<10x40xf32>, vector<2x40xf32> -> vector<2x40xf32>
    %168 = arith.addf %166, %167 : vector<2x40xf32>
    %169 = arith.addf %168, %17 : vector<2x40xf32>
    %170 = vector.extract_strided_slice %169 {offsets = [0, 0], sizes = [2, 30], strides = [1, 1]} : vector<2x40xf32> to vector<2x30xf32>
    %171 = arith.negf %170 : vector<2x30xf32>
    %172 = math.exp %171 : vector<2x30xf32>
    %cst_46 = arith.constant 1.000000e+00 : f32
    %173 = vector.broadcast %cst_46 : f32 to vector<2x30xf32>
    %174 = arith.addf %173, %172 : vector<2x30xf32>
    %175 = arith.divf %173, %174 : vector<2x30xf32>
    %176 = vector.extract_strided_slice %169 {offsets = [0, 30], sizes = [2, 10], strides = [1, 1]} : vector<2x40xf32> to vector<2x10xf32>
    %177 = math.tanh %176 : vector<2x10xf32>
    %178 = vector.extract_strided_slice %175 {offsets = [0, 0], sizes = [2, 10], strides = [1, 1]} : vector<2x30xf32> to vector<2x10xf32>
    %179 = vector.extract_strided_slice %175 {offsets = [0, 10], sizes = [2, 10], strides = [1, 1]} : vector<2x30xf32> to vector<2x10xf32>
    %180 = vector.extract_strided_slice %175 {offsets = [0, 20], sizes = [2, 10], strides = [1, 1]} : vector<2x30xf32> to vector<2x10xf32>
    %181 = arith.mulf %179, %142 : vector<2x10xf32>
    %182 = arith.mulf %178, %177 : vector<2x10xf32>
    %183 = arith.addf %181, %182 : vector<2x10xf32>
    %184 = math.tanh %183 : vector<2x10xf32>
    %185 = arith.mulf %180, %184 : vector<2x10xf32>
    %c4_i32 = arith.constant 4 : i32
    %186 = arith.index_cast %c4_i32 : i32 to index
    %c0_47 = arith.constant 0 : index
    %c0_48 = arith.constant 0 : index
    %187 = vector.load %arg10[%186, %c0_47, %c0_48] : memref<8x2x40xf32, #tpu.memory_space<vmem>>, vector<1x2x40xf32>
    %188 = vector.shape_cast %187 : vector<1x2x40xf32> to vector<2x40xf32>
    %cst_49 = arith.constant dense<0.000000e+00> : vector<2x40xf32>
    %189 = tpu.matmul %165, %12, %cst_49 {dimension_numbers = #tpu.dot_dimension_numbers<[1], [0], [0], [1], [0, 0, 1, 1], [], []>} : vector<2x10xf32>, vector<10x40xf32>, vector<2x40xf32> -> vector<2x40xf32>
    %190 = arith.addf %188, %189 : vector<2x40xf32>
    %191 = vector.extract_strided_slice %190 {offsets = [0, 0], sizes = [2, 30], strides = [1, 1]} : vector<2x40xf32> to vector<2x30xf32>
    %192 = arith.negf %191 : vector<2x30xf32>
    %193 = math.exp %192 : vector<2x30xf32>
    %cst_50 = arith.constant 1.000000e+00 : f32
    %194 = vector.broadcast %cst_50 : f32 to vector<2x30xf32>
    %195 = arith.addf %194, %193 : vector<2x30xf32>
    %196 = arith.divf %194, %195 : vector<2x30xf32>
    %197 = vector.extract_strided_slice %190 {offsets = [0, 30], sizes = [2, 10], strides = [1, 1]} : vector<2x40xf32> to vector<2x10xf32>
    %198 = math.tanh %197 : vector<2x10xf32>
    %199 = vector.extract_strided_slice %196 {offsets = [0, 0], sizes = [2, 10], strides = [1, 1]} : vector<2x30xf32> to vector<2x10xf32>
    %200 = vector.extract_strided_slice %196 {offsets = [0, 10], sizes = [2, 10], strides = [1, 1]} : vector<2x30xf32> to vector<2x10xf32>
    %201 = vector.extract_strided_slice %196 {offsets = [0, 20], sizes = [2, 10], strides = [1, 1]} : vector<2x30xf32> to vector<2x10xf32>
    %202 = arith.mulf %200, %163 : vector<2x10xf32>
    %203 = arith.mulf %199, %198 : vector<2x10xf32>
    %204 = arith.addf %202, %203 : vector<2x10xf32>
    %205 = math.tanh %204 : vector<2x10xf32>
    %206 = arith.mulf %201, %205 : vector<2x10xf32>
    %cst_51 = arith.constant dense<0.000000e+00> : vector<2x40xf32>
    %207 = tpu.matmul %206, %13, %cst_51 {dimension_numbers = #tpu.dot_dimension_numbers<[1], [0], [0], [1], [0, 0, 1, 1], [], []>} : vector<2x10xf32>, vector<10x40xf32>, vector<2x40xf32> -> vector<2x40xf32>
    %cst_52 = arith.constant dense<0.000000e+00> : vector<2x40xf32>
    %208 = tpu.matmul %185, %14, %cst_52 {dimension_numbers = #tpu.dot_dimension_numbers<[1], [0], [0], [1], [0, 0, 1, 1], [], []>} : vector<2x10xf32>, vector<10x40xf32>, vector<2x40xf32> -> vector<2x40xf32>
    %209 = arith.addf %207, %208 : vector<2x40xf32>
    %210 = arith.addf %209, %17 : vector<2x40xf32>
    %211 = vector.extract_strided_slice %210 {offsets = [0, 0], sizes = [2, 30], strides = [1, 1]} : vector<2x40xf32> to vector<2x30xf32>
    %212 = arith.negf %211 : vector<2x30xf32>
    %213 = math.exp %212 : vector<2x30xf32>
    %cst_53 = arith.constant 1.000000e+00 : f32
    %214 = vector.broadcast %cst_53 : f32 to vector<2x30xf32>
    %215 = arith.addf %214, %213 : vector<2x30xf32>
    %216 = arith.divf %214, %215 : vector<2x30xf32>
    %217 = vector.extract_strided_slice %210 {offsets = [0, 30], sizes = [2, 10], strides = [1, 1]} : vector<2x40xf32> to vector<2x10xf32>
    %218 = math.tanh %217 : vector<2x10xf32>
    %219 = vector.extract_strided_slice %216 {offsets = [0, 0], sizes = [2, 10], strides = [1, 1]} : vector<2x30xf32> to vector<2x10xf32>
    %220 = vector.extract_strided_slice %216 {offsets = [0, 10], sizes = [2, 10], strides = [1, 1]} : vector<2x30xf32> to vector<2x10xf32>
    %221 = vector.extract_strided_slice %216 {offsets = [0, 20], sizes = [2, 10], strides = [1, 1]} : vector<2x30xf32> to vector<2x10xf32>
    %222 = arith.mulf %220, %183 : vector<2x10xf32>
    %223 = arith.mulf %219, %218 : vector<2x10xf32>
    %224 = arith.addf %222, %223 : vector<2x10xf32>
    %225 = math.tanh %224 : vector<2x10xf32>
    %226 = arith.mulf %221, %225 : vector<2x10xf32>
    %c5_i32 = arith.constant 5 : i32
    %227 = arith.index_cast %c5_i32 : i32 to index
    %c0_54 = arith.constant 0 : index
    %c0_55 = arith.constant 0 : index
    %228 = vector.load %arg10[%227, %c0_54, %c0_55] : memref<8x2x40xf32, #tpu.memory_space<vmem>>, vector<1x2x40xf32>
    %229 = vector.shape_cast %228 : vector<1x2x40xf32> to vector<2x40xf32>
    %cst_56 = arith.constant dense<0.000000e+00> : vector<2x40xf32>
    %230 = tpu.matmul %206, %12, %cst_56 {dimension_numbers = #tpu.dot_dimension_numbers<[1], [0], [0], [1], [0, 0, 1, 1], [], []>} : vector<2x10xf32>, vector<10x40xf32>, vector<2x40xf32> -> vector<2x40xf32>
    %231 = arith.addf %229, %230 : vector<2x40xf32>
    %232 = vector.extract_strided_slice %231 {offsets = [0, 0], sizes = [2, 30], strides = [1, 1]} : vector<2x40xf32> to vector<2x30xf32>
    %233 = arith.negf %232 : vector<2x30xf32>
    %234 = math.exp %233 : vector<2x30xf32>
    %cst_57 = arith.constant 1.000000e+00 : f32
    %235 = vector.broadcast %cst_57 : f32 to vector<2x30xf32>
    %236 = arith.addf %235, %234 : vector<2x30xf32>
    %237 = arith.divf %235, %236 : vector<2x30xf32>
    %238 = vector.extract_strided_slice %231 {offsets = [0, 30], sizes = [2, 10], strides = [1, 1]} : vector<2x40xf32> to vector<2x10xf32>
    %239 = math.tanh %238 : vector<2x10xf32>
    %240 = vector.extract_strided_slice %237 {offsets = [0, 0], sizes = [2, 10], strides = [1, 1]} : vector<2x30xf32> to vector<2x10xf32>
    %241 = vector.extract_strided_slice %237 {offsets = [0, 10], sizes = [2, 10], strides = [1, 1]} : vector<2x30xf32> to vector<2x10xf32>
    %242 = vector.extract_strided_slice %237 {offsets = [0, 20], sizes = [2, 10], strides = [1, 1]} : vector<2x30xf32> to vector<2x10xf32>
    %243 = arith.mulf %241, %204 : vector<2x10xf32>
    %244 = arith.mulf %240, %239 : vector<2x10xf32>
    %245 = arith.addf %243, %244 : vector<2x10xf32>
    %246 = math.tanh %245 : vector<2x10xf32>
    %247 = arith.mulf %242, %246 : vector<2x10xf32>
    %cst_58 = arith.constant dense<0.000000e+00> : vector<2x40xf32>
    %248 = tpu.matmul %247, %13, %cst_58 {dimension_numbers = #tpu.dot_dimension_numbers<[1], [0], [0], [1], [0, 0, 1, 1], [], []>} : vector<2x10xf32>, vector<10x40xf32>, vector<2x40xf32> -> vector<2x40xf32>
    %cst_59 = arith.constant dense<0.000000e+00> : vector<2x40xf32>
    %249 = tpu.matmul %226, %14, %cst_59 {dimension_numbers = #tpu.dot_dimension_numbers<[1], [0], [0], [1], [0, 0, 1, 1], [], []>} : vector<2x10xf32>, vector<10x40xf32>, vector<2x40xf32> -> vector<2x40xf32>
    %250 = arith.addf %248, %249 : vector<2x40xf32>
    %251 = arith.addf %250, %17 : vector<2x40xf32>
    %252 = vector.extract_strided_slice %251 {offsets = [0, 0], sizes = [2, 30], strides = [1, 1]} : vector<2x40xf32> to vector<2x30xf32>
    %253 = arith.negf %252 : vector<2x30xf32>
    %254 = math.exp %253 : vector<2x30xf32>
    %cst_60 = arith.constant 1.000000e+00 : f32
    %255 = vector.broadcast %cst_60 : f32 to vector<2x30xf32>
    %256 = arith.addf %255, %254 : vector<2x30xf32>
    %257 = arith.divf %255, %256 : vector<2x30xf32>
    %258 = vector.extract_strided_slice %251 {offsets = [0, 30], sizes = [2, 10], strides = [1, 1]} : vector<2x40xf32> to vector<2x10xf32>
    %259 = math.tanh %258 : vector<2x10xf32>
    %260 = vector.extract_strided_slice %257 {offsets = [0, 0], sizes = [2, 10], strides = [1, 1]} : vector<2x30xf32> to vector<2x10xf32>
    %261 = vector.extract_strided_slice %257 {offsets = [0, 10], sizes = [2, 10], strides = [1, 1]} : vector<2x30xf32> to vector<2x10xf32>
    %262 = vector.extract_strided_slice %257 {offsets = [0, 20], sizes = [2, 10], strides = [1, 1]} : vector<2x30xf32> to vector<2x10xf32>
    %263 = arith.mulf %261, %224 : vector<2x10xf32>
    %264 = arith.mulf %260, %259 : vector<2x10xf32>
    %265 = arith.addf %263, %264 : vector<2x10xf32>
    %266 = math.tanh %265 : vector<2x10xf32>
    %267 = arith.mulf %262, %266 : vector<2x10xf32>
    %c6_i32 = arith.constant 6 : i32
    %268 = arith.index_cast %c6_i32 : i32 to index
    %c0_61 = arith.constant 0 : index
    %c0_62 = arith.constant 0 : index
    %269 = vector.load %arg10[%268, %c0_61, %c0_62] : memref<8x2x40xf32, #tpu.memory_space<vmem>>, vector<1x2x40xf32>
    %270 = vector.shape_cast %269 : vector<1x2x40xf32> to vector<2x40xf32>
    %cst_63 = arith.constant dense<0.000000e+00> : vector<2x40xf32>
    %271 = tpu.matmul %247, %12, %cst_63 {dimension_numbers = #tpu.dot_dimension_numbers<[1], [0], [0], [1], [0, 0, 1, 1], [], []>} : vector<2x10xf32>, vector<10x40xf32>, vector<2x40xf32> -> vector<2x40xf32>
    %272 = arith.addf %270, %271 : vector<2x40xf32>
    %273 = vector.extract_strided_slice %272 {offsets = [0, 0], sizes = [2, 30], strides = [1, 1]} : vector<2x40xf32> to vector<2x30xf32>
    %274 = arith.negf %273 : vector<2x30xf32>
    %275 = math.exp %274 : vector<2x30xf32>
    %cst_64 = arith.constant 1.000000e+00 : f32
    %276 = vector.broadcast %cst_64 : f32 to vector<2x30xf32>
    %277 = arith.addf %276, %275 : vector<2x30xf32>
    %278 = arith.divf %276, %277 : vector<2x30xf32>
    %279 = vector.extract_strided_slice %272 {offsets = [0, 30], sizes = [2, 10], strides = [1, 1]} : vector<2x40xf32> to vector<2x10xf32>
    %280 = math.tanh %279 : vector<2x10xf32>
    %281 = vector.extract_strided_slice %278 {offsets = [0, 0], sizes = [2, 10], strides = [1, 1]} : vector<2x30xf32> to vector<2x10xf32>
    %282 = vector.extract_strided_slice %278 {offsets = [0, 10], sizes = [2, 10], strides = [1, 1]} : vector<2x30xf32> to vector<2x10xf32>
    %283 = vector.extract_strided_slice %278 {offsets = [0, 20], sizes = [2, 10], strides = [1, 1]} : vector<2x30xf32> to vector<2x10xf32>
    %284 = arith.mulf %282, %245 : vector<2x10xf32>
    %285 = arith.mulf %281, %280 : vector<2x10xf32>
    %286 = arith.addf %284, %285 : vector<2x10xf32>
    %287 = math.tanh %286 : vector<2x10xf32>
    %288 = arith.mulf %283, %287 : vector<2x10xf32>
    %cst_65 = arith.constant dense<0.000000e+00> : vector<2x40xf32>
    %289 = tpu.matmul %288, %13, %cst_65 {dimension_numbers = #tpu.dot_dimension_numbers<[1], [0], [0], [1], [0, 0, 1, 1], [], []>} : vector<2x10xf32>, vector<10x40xf32>, vector<2x40xf32> -> vector<2x40xf32>
    %cst_66 = arith.constant dense<0.000000e+00> : vector<2x40xf32>
    %290 = tpu.matmul %267, %14, %cst_66 {dimension_numbers = #tpu.dot_dimension_numbers<[1], [0], [0], [1], [0, 0, 1, 1], [], []>} : vector<2x10xf32>, vector<10x40xf32>, vector<2x40xf32> -> vector<2x40xf32>
    %291 = arith.addf %289, %290 : vector<2x40xf32>
    %292 = arith.addf %291, %17 : vector<2x40xf32>
    %293 = vector.extract_strided_slice %292 {offsets = [0, 0], sizes = [2, 30], strides = [1, 1]} : vector<2x40xf32> to vector<2x30xf32>
    %294 = arith.negf %293 : vector<2x30xf32>
    %295 = math.exp %294 : vector<2x30xf32>
    %cst_67 = arith.constant 1.000000e+00 : f32
    %296 = vector.broadcast %cst_67 : f32 to vector<2x30xf32>
    %297 = arith.addf %296, %295 : vector<2x30xf32>
    %298 = arith.divf %296, %297 : vector<2x30xf32>
    %299 = vector.extract_strided_slice %292 {offsets = [0, 30], sizes = [2, 10], strides = [1, 1]} : vector<2x40xf32> to vector<2x10xf32>
    %300 = math.tanh %299 : vector<2x10xf32>
    %301 = vector.extract_strided_slice %298 {offsets = [0, 0], sizes = [2, 10], strides = [1, 1]} : vector<2x30xf32> to vector<2x10xf32>
    %302 = vector.extract_strided_slice %298 {offsets = [0, 10], sizes = [2, 10], strides = [1, 1]} : vector<2x30xf32> to vector<2x10xf32>
    %303 = vector.extract_strided_slice %298 {offsets = [0, 20], sizes = [2, 10], strides = [1, 1]} : vector<2x30xf32> to vector<2x10xf32>
    %304 = arith.mulf %302, %265 : vector<2x10xf32>
    %305 = arith.mulf %301, %300 : vector<2x10xf32>
    %306 = arith.addf %304, %305 : vector<2x10xf32>
    %307 = math.tanh %306 : vector<2x10xf32>
    %308 = arith.mulf %303, %307 : vector<2x10xf32>
    %c7_i32 = arith.constant 7 : i32
    %309 = arith.index_cast %c7_i32 : i32 to index
    %c0_68 = arith.constant 0 : index
    %c0_69 = arith.constant 0 : index
    %310 = vector.load %arg10[%309, %c0_68, %c0_69] : memref<8x2x40xf32, #tpu.memory_space<vmem>>, vector<1x2x40xf32>
    %311 = vector.shape_cast %310 : vector<1x2x40xf32> to vector<2x40xf32>
    %cst_70 = arith.constant dense<0.000000e+00> : vector<2x40xf32>
    %312 = tpu.matmul %288, %12, %cst_70 {dimension_numbers = #tpu.dot_dimension_numbers<[1], [0], [0], [1], [0, 0, 1, 1], [], []>} : vector<2x10xf32>, vector<10x40xf32>, vector<2x40xf32> -> vector<2x40xf32>
    %313 = arith.addf %311, %312 : vector<2x40xf32>
    %314 = vector.extract_strided_slice %313 {offsets = [0, 0], sizes = [2, 30], strides = [1, 1]} : vector<2x40xf32> to vector<2x30xf32>
    %315 = arith.negf %314 : vector<2x30xf32>
    %316 = math.exp %315 : vector<2x30xf32>
    %cst_71 = arith.constant 1.000000e+00 : f32
    %317 = vector.broadcast %cst_71 : f32 to vector<2x30xf32>
    %318 = arith.addf %317, %316 : vector<2x30xf32>
    %319 = arith.divf %317, %318 : vector<2x30xf32>
    %320 = vector.extract_strided_slice %313 {offsets = [0, 30], sizes = [2, 10], strides = [1, 1]} : vector<2x40xf32> to vector<2x10xf32>
    %321 = math.tanh %320 : vector<2x10xf32>
    %322 = vector.extract_strided_slice %319 {offsets = [0, 0], sizes = [2, 10], strides = [1, 1]} : vector<2x30xf32> to vector<2x10xf32>
    %323 = vector.extract_strided_slice %319 {offsets = [0, 10], sizes = [2, 10], strides = [1, 1]} : vector<2x30xf32> to vector<2x10xf32>
    %324 = vector.extract_strided_slice %319 {offsets = [0, 20], sizes = [2, 10], strides = [1, 1]} : vector<2x30xf32> to vector<2x10xf32>
    %325 = arith.mulf %323, %286 : vector<2x10xf32>
    %326 = arith.mulf %322, %321 : vector<2x10xf32>
    %327 = arith.addf %325, %326 : vector<2x10xf32>
    %328 = math.tanh %327 : vector<2x10xf32>
    %329 = arith.mulf %324, %328 : vector<2x10xf32>
    %cst_72 = arith.constant dense<0.000000e+00> : vector<2x40xf32>
    %330 = tpu.matmul %329, %13, %cst_72 {dimension_numbers = #tpu.dot_dimension_numbers<[1], [0], [0], [1], [0, 0, 1, 1], [], []>} : vector<2x10xf32>, vector<10x40xf32>, vector<2x40xf32> -> vector<2x40xf32>
    %cst_73 = arith.constant dense<0.000000e+00> : vector<2x40xf32>
    %331 = tpu.matmul %308, %14, %cst_73 {dimension_numbers = #tpu.dot_dimension_numbers<[1], [0], [0], [1], [0, 0, 1, 1], [], []>} : vector<2x10xf32>, vector<10x40xf32>, vector<2x40xf32> -> vector<2x40xf32>
    %332 = arith.addf %330, %331 : vector<2x40xf32>
    %333 = arith.addf %332, %17 : vector<2x40xf32>
    %334 = vector.extract_strided_slice %333 {offsets = [0, 0], sizes = [2, 30], strides = [1, 1]} : vector<2x40xf32> to vector<2x30xf32>
    %335 = arith.negf %334 : vector<2x30xf32>
    %336 = math.exp %335 : vector<2x30xf32>
    %cst_74 = arith.constant 1.000000e+00 : f32
    %337 = vector.broadcast %cst_74 : f32 to vector<2x30xf32>
    %338 = arith.addf %337, %336 : vector<2x30xf32>
    %339 = arith.divf %337, %338 : vector<2x30xf32>
    %340 = vector.extract_strided_slice %333 {offsets = [0, 30], sizes = [2, 10], strides = [1, 1]} : vector<2x40xf32> to vector<2x10xf32>
    %341 = math.tanh %340 : vector<2x10xf32>
    %342 = vector.extract_strided_slice %339 {offsets = [0, 0], sizes = [2, 10], strides = [1, 1]} : vector<2x30xf32> to vector<2x10xf32>
    %343 = vector.extract_strided_slice %339 {offsets = [0, 10], sizes = [2, 10], strides = [1, 1]} : vector<2x30xf32> to vector<2x10xf32>
    %344 = vector.extract_strided_slice %339 {offsets = [0, 20], sizes = [2, 10], strides = [1, 1]} : vector<2x30xf32> to vector<2x10xf32>
    %345 = arith.mulf %343, %306 : vector<2x10xf32>
    %346 = arith.mulf %342, %341 : vector<2x10xf32>
    %347 = arith.addf %345, %346 : vector<2x10xf32>
    %348 = math.tanh %347 : vector<2x10xf32>
    %349 = arith.mulf %344, %348 : vector<2x10xf32>
    %c8_i32 = arith.constant 8 : i32
    %c0_75 = arith.constant 0 : index
    %c0_76 = arith.constant 0 : index
    %350 = vector.load %arg7[%c0_75, %c0_76] : memref<10x2xf32, #tpu.memory_space<vmem>>, vector<10x2xf32>
    %cst_77 = arith.constant dense<0.000000e+00> : vector<2x2xf32>
    %351 = tpu.matmul %349, %350, %cst_77 {dimension_numbers = #tpu.dot_dimension_numbers<[1], [0], [0], [1], [0, 0, 1, 1], [], []>} : vector<2x10xf32>, vector<10x2xf32>, vector<2x2xf32> -> vector<2x2xf32>
    %c0_78 = arith.constant 0 : index
    %c0_79 = arith.constant 0 : index
    %352 = vector.load %arg8[%c0_78, %c0_79] : memref<1x2xf32, #tpu.memory_space<vmem>>, vector<1x2xf32>
    %353 = vector.broadcast %352 : vector<1x2xf32> to vector<2x2xf32>
    %354 = arith.addf %351, %353 : vector<2x2xf32>
    %c0_80 = arith.constant 0 : index
    %c0_81 = arith.constant 0 : index
    %355 = vector.load %arg9[%c0_80, %c0_81] : memref<2x2xf32, #tpu.memory_space<vmem>>, vector<2x2xf32>
    tpu.vector_store %arg9[%c0_80, %c0_81], %354 {strides = array<i32>} : memref<2x2xf32, #tpu.memory_space<vmem>>, vector<2x2xf32>,
    return
  }
}

</mosaic_0001>

<llo_original>
// kernel: tpu_custom_call.1
$region0: #{tpu_custom_call.1}
  #allocation0 [shape = 'u32[]', space=smem, size = 0x4, offset = 0x4, fixed_abs, tag = 'smem constant byte address 0x4 - core index']
  #allocation1 [shape = 'u32[144,128]{1,0:T(1,128)}', space=vmem, size = 0x12000, scoped, tag = 'internal scratch']
  #allocation2 [shape = 'f32[8,2,40]{2,1,0:T(2,128)}', space=vmem, size = 0x2000, scoped, tag = 'scratch operand']
  %s0 = inlined_call_operand.vmem [shape: f32[8,2], index: 0, kind: input, shape index: {}]
  %s1 = inlined_call_operand.vmem [shape: f32[1,40], index: 1, kind: input, shape index: {}]
  %s2 = inlined_call_operand.vmem [shape: f32[10,40], index: 2, kind: input, shape index: {}]
  %s3 = inlined_call_operand.vmem [shape: f32[1,40], index: 3, kind: input, shape index: {}]
  %s4 = inlined_call_operand.vmem [shape: f32[10,40], index: 4, kind: input, shape index: {}]
  %s5 = inlined_call_operand.hbm [shape: f32[10,40], index: 5, kind: input, shape index: {}]
  %s6 = inlined_call_operand.vmem [shape: f32[1,40], index: 6, kind: input, shape index: {}]
  %s7 = inlined_call_operand.vmem [shape: f32[10,2], index: 7, kind: input, shape index: {}]
  %s8 = inlined_call_operand.vmem [shape: f32[1,2], index: 8, kind: input, shape index: {}]
  %s9 = inlined_call_operand.hbm [shape: f32[2,2], index: 9, kind: output, shape index: {}]
  %s10 = sld [smem:[#allocation0]]
  $region50: #{tpu_custom_call.1} parent=0
    _
  %s12 = ssub.s32 1, %s10
  %s13 = scalar_select 0, %s12, %s10
  $region1: #{tpu_custom_call.1} parent=0
    #allocation3 [shape = 'u8[8192]{0}', space=vmem, size = 0x2000, scoped, tag = 'input window, operand 5, single buffered']
    #allocation4 [shape = 's32[1]{0}', space=sflag, size = 0x4, scoped, tag = 'scoped memory for tpu_custom_call.1']
    #allocation5 [shape = 's32[1]{0}', space=sflag, size = 0x4, scoped, tag = 'scoped memory for tpu_custom_call.1']
    #allocation6 [shape = 'u8[1024]{0}', space=vmem, size = 0x400, scoped, tag = 'output window, operand 0, single buffered']
    %14 = vsyncpa [#allocation4], 0
    %15 = vsyncpa [#allocation5], 0
    // Predicated region
    $region2: #{tpu_custom_call.1} parent=1 // pred_check
      _
    $region3: #{tpu_custom_call.1} parent=1 // pred_check_branch
      %17 = sbr.rel (0) target = $region5
    $region4: #{tpu_custom_call.1} parent=1 // pred_region
      _
    $region5: #{tpu_custom_call.1} parent=1 // pred_fallthru
      _
    // Predicated region
    $region6: #{tpu_custom_call.1} parent=1 // pred_check
      _
    $region7: #{tpu_custom_call.1} parent=1 // pred_check_branch
      %19 = sbr.rel (0) target = $region9
    $region8: #{tpu_custom_call.1} parent=1 // pred_region
      _
    $region9: #{tpu_custom_call.1} parent=1 // pred_fallthru
      _
    // Predicated region
    $region10: #{tpu_custom_call.1} parent=1 // pred_check
      _
    $region11: #{tpu_custom_call.1} parent=1 // pred_check_branch
      %21 = sbr.rel (0) target = $region13
    $region12: #{tpu_custom_call.1} parent=1 // pred_region
      _
    $region13: #{tpu_custom_call.1} parent=1 // pred_fallthru
      _
    // Predicated region
    $region14: #{tpu_custom_call.1} parent=1 // pred_check
      _
    $region15: #{tpu_custom_call.1} parent=1 // pred_check_branch
      %23 = sbr.rel (0) target = $region17
    $region16: #{tpu_custom_call.1} parent=1 // pred_region
      _
    $region17: #{tpu_custom_call.1} parent=1 // pred_fallthru
      _
    // Predicated region
    $region18: #{tpu_custom_call.1} parent=1 // pred_check
      _
    $region19: #{tpu_custom_call.1} parent=1 // pred_check_branch
      %25 = sbr.rel (0) target = $region21
    $region20: #{tpu_custom_call.1} parent=1 // pred_region
      _
    $region21: #{tpu_custom_call.1} parent=1 // pred_fallthru
      _
    // Predicated region
    $region22: #{tpu_custom_call.1} parent=1 // pred_check
      _
    $region23: #{tpu_custom_call.1} parent=1 // pred_check_branch
      %27 = sbr.rel (0) target = $region25
    $region24: #{tpu_custom_call.1} parent=1 // pred_region
      %s29 = ssub.s32 256, 256
      %30 = vsyncadd [#allocation4], %s29
      %s31 = sshll.u32 [#allocation3], 4
      %s32 = int_to_ptr.vmem [resolvable:$true] %s31
      %37 = dma.hbm_to_vmem [thread:$0]  %s5, 256, %s32, [#allocation4], 128, 128, 8
    $region25: #{tpu_custom_call.1} parent=1 // pred_fallthru
      _
    // Predicated region
    $region26: #{tpu_custom_call.1} parent=1 // pred_check
      _
    $region27: #{tpu_custom_call.1} parent=1 // pred_check_branch
      %39 = sbr.rel (0) target = $region29
    $region28: #{tpu_custom_call.1} parent=1 // pred_region
      _
    $region29: #{tpu_custom_call.1} parent=1 // pred_fallthru
      _
    // Predicated region
    $region30: #{tpu_custom_call.1} parent=1 // pred_check
      _
    $region31: #{tpu_custom_call.1} parent=1 // pred_check_branch
      %41 = sbr.rel (0) target = $region33
    $region32: #{tpu_custom_call.1} parent=1 // pred_region
      _
    $region33: #{tpu_custom_call.1} parent=1 // pred_fallthru
      _
    // Predicated region
    $region34: #{tpu_custom_call.1} parent=1 // pred_check
      _
    $region35: #{tpu_custom_call.1} parent=1 // pred_check_branch
      %43 = sbr.rel (0) target = $region37
    $region36: #{tpu_custom_call.1} parent=1 // pred_region
      _
    $region37: #{tpu_custom_call.1} parent=1 // pred_fallthru
      _
    // Predicated region
    $region38: #{tpu_custom_call.1} parent=1 // pred_check
      _
    $region39: #{tpu_custom_call.1} parent=1 // pred_check_branch
      %45 = sbr.rel (0) target = $region41
    $region40: #{tpu_custom_call.1} parent=1 // pred_region
      %46 = dma.done [#allocation4], 256
    $region41: #{tpu_custom_call.1} parent=1 // pred_fallthru
      _
    %v47 = vld [vmem:[%s0] sm:$0xff]
    %v48 = vlaneseq
    %v49 = vshrl.u32 %v48, 7
    %v50 = vsub.s32 0, %v49
    %v51 = vrot.slane %v47, %v50
    %53 = vbcast.lane.b32.xlu0 %v51, 256
    %v54 = vpop.permute.xlu0 %53
    %v55 = vlaneseq
    %v56 = vshrl.u32 %v55, 7
    %v57 = vsub.s32 1, %v56
    %v58 = vrot.slane %v47, %v57
    %60 = vbcast.lane.b32.xlu0 %v58, 256
    %v61 = vpop.permute.xlu0 %60
    %v62 = vlaneseq
    %v63 = vshrl.u32 %v62, 7
    %v64 = vsub.s32 2, %v63
    %v65 = vrot.slane %v47, %v64
    %67 = vbcast.lane.b32.xlu0 %v65, 256
    %v68 = vpop.permute.xlu0 %67
    %v69 = vlaneseq
    %v70 = vshrl.u32 %v69, 7
    %v71 = vsub.s32 3, %v70
    %v72 = vrot.slane %v47, %v71
    %74 = vbcast.lane.b32.xlu0 %v72, 256
    %v75 = vpop.permute.xlu0 %74
    %v76 = vlaneseq
    %v77 = vshrl.u32 %v76, 7
    %v78 = vsub.s32 4, %v77
    %v79 = vrot.slane %v47, %v78
    %81 = vbcast.lane.b32.xlu0 %v79, 256
    %v82 = vpop.permute.xlu0 %81
    %v83 = vlaneseq
    %v84 = vshrl.u32 %v83, 7
    %v85 = vsub.s32 5, %v84
    %v86 = vrot.slane %v47, %v85
    %88 = vbcast.lane.b32.xlu0 %v86, 256
    %v89 = vpop.permute.xlu0 %88
    %v90 = vlaneseq
    %v91 = vshrl.u32 %v90, 7
    %v92 = vsub.s32 6, %v91
    %v93 = vrot.slane %v47, %v92
    %95 = vbcast.lane.b32.xlu0 %v93, 256
    %v96 = vpop.permute.xlu0 %95
    %v97 = vlaneseq
    %v98 = vshrl.u32 %v97, 7
    %v99 = vsub.s32 7, %v98
    %v100 = vrot.slane %v47, %v99
    %102 = vbcast.lane.b32.xlu0 %v100, 256
    %v103 = vpop.permute.xlu0 %102
    %v104 = vld [vmem:[%s1] sm:$0x1]
    %v106 = vlaneseq
    %v107 = vshrl.u32 %v106, 7
    %v108 = vsub.s32 0, %v107
    %v109 = vrot.slane %v104, %v108
    %v111 = vmul.f32 %v54, %v109
    %v112 = vmul.f32 %v61, %v109
    %v113 = vmul.f32 %v68, %v109
    %v114 = vmul.f32 %v75, %v109
    %v115 = vmul.f32 %v82, %v109
    %v116 = vmul.f32 %v89, %v109
    %v117 = vmul.f32 %v96, %v109
    %v118 = vmul.f32 %v103, %v109
    %v119 = vld [vmem:[%s3] sm:$0x1]
    %v121 = vlaneseq
    %v122 = vshrl.u32 %v121, 7
    %v123 = vsub.s32 0, %v122
    %v124 = vrot.slane %v119, %v123
    %v126 = vadd.f32 %v111, %v124
    %v127 = vadd.f32 %v112, %v124
    %v128 = vadd.f32 %v113, %v124
    %v129 = vadd.f32 %v114, %v124
    %v130 = vadd.f32 %v115, %v124
    %v131 = vadd.f32 %v116, %v124
    %v132 = vadd.f32 %v117, %v124
    %v133 = vadd.f32 %v118, %v124
    %vm134 = vcmask 320512
    %135 = vst.msk [vmem:[#allocation2] sm:$0x3] %vm134, %v126
    %136 = vst.msk [vmem:[#allocation2 + $0x2] sm:$0x3] %vm134, %v127
    %137 = vst.msk [vmem:[#allocation2 + $0x4] sm:$0x3] %vm134, %v128
    %138 = vst.msk [vmem:[#allocation2 + $0x6] sm:$0x3] %vm134, %v129
    %139 = vst.msk [vmem:[#allocation2 + $0x8] sm:$0x3] %vm134, %v130
    %140 = vst.msk [vmem:[#allocation2 + $0xa] sm:$0x3] %vm134, %v131
    %141 = vst.msk [vmem:[#allocation2 + $0xc] sm:$0x3] %vm134, %v132
    %142 = vst.msk [vmem:[#allocation2 + $0xe] sm:$0x3] %vm134, %v133
    %v143 = vld [vmem:[%s2] sm:$0xff]
    %v144 = vld [vmem:[%s2 + $0x8] sm:$0x3]
    %v145 = vld [vmem:[%s4] sm:$0xff]
    %v146 = vld [vmem:[%s4 + $0x8] sm:$0x3]
    %v147 = vld [vmem:[#allocation3] sm:$0xff]
    %v148 = vld [vmem:[#allocation3 + $0x8] sm:$0x3]
    %v149 = vld [vmem:[%s6] sm:$0x1]
    %v151 = vlaneseq
    %v152 = vshrl.u32 %v151, 7
    %v153 = vsub.s32 0, %v152
    %v154 = vrot.slane %v149, %v153
    %v156 = vld [vmem:[#allocation2] sm:$0x3]
    %vm157 = vcmask 80896
    %v159 = vsel %vm157, 0.0, 0
    %vm161 = vcmask 1041408
    %v163 = vsel %vm161, %v144, 0
    %165 = vmatprep.subr.mxu0 0.0
    %166 = vmatpush1.msra.mxu0 %v143
    %167 = vmatprep.subr.mxu0 0.0
    %168 = vmatpush1.msra.mxu0 %v163
    %169 = vmatprep.subr.mxu0 0.0
    %170 = vmatpush1.msra.mxu0 0.0
    %171 = vmatprep.subr.mxu0 0.0
    %172 = vmatpush1.msra.mxu0 0.0
    %173 = vmatprep.subr.mxu0 0.0
    %174 = vmatpush1.msra.mxu0 0.0
    %175 = vmatprep.subr.mxu0 0.0
    %176 = vmatpush1.msra.mxu0 0.0
    %177 = vmatprep.subr.mxu0 0.0
    %178 = vmatpush1.msra.mxu0 0.0
    %179 = vmatprep.subr.mxu0 0.0
    %180 = vmatpush1.msra.mxu0 0.0
    %181 = vmatprep.subr.mxu0 0.0
    %182 = vmatpush1.msra.mxu0 0.0
    %183 = vmatprep.subr.mxu0 0.0
    %184 = vmatpush1.msra.mxu0 0.0
    %185 = vmatprep.subr.mxu0 0.0
    %186 = vmatpush1.msra.mxu0 0.0
    %187 = vmatprep.subr.mxu0 0.0
    %188 = vmatpush1.msra.mxu0 0.0
    %189 = vmatprep.subr.mxu0 0.0
    %190 = vmatpush1.msra.mxu0 0.0
    %191 = vmatprep.subr.mxu0 0.0
    %192 = vmatpush1.msra.mxu0 0.0
    %193 = vmatprep.subr.mxu0 0.0
    %194 = vmatpush1.msra.mxu0 0.0
    %195 = vmatprep.subr.mxu0 0.0
    %196 = vmatpush1.msra.mxu0 0.0
    %197 = vmatprep.subr.mxu0 0.0
    %198 = vmatpush1.msra.mxu0 0.0
    %199 = vmatprep.subr.mxu0 0.0
    %200 = vmatpush1.msra.mxu0 0.0
    %201 = vmatprep.subr.mxu0 0.0
    %202 = vmatpush1.msra.mxu0 0.0
    %203 = vmatprep.subr.mxu0 0.0
    %204 = vmatpush1.msra.mxu0 0.0
    %205 = vmatprep.subr.mxu0 0.0
    %206 = vmatpush1.msra.mxu0 0.0
    %207 = vmatprep.subr.mxu0 0.0
    %208 = vmatpush1.msra.mxu0 0.0
    %209 = vmatprep.subr.mxu0 0.0
    %210 = vmatpush1.msra.mxu0 0.0
    %211 = vmatprep.subr.mxu0 0.0
    %212 = vmatpush1.msra.mxu0 0.0
    %213 = vmatprep.subr.mxu0 0.0
    %214 = vmatpush1.msra.mxu0 0.0
    %215 = vmatprep.subr.mxu0 0.0
    %216 = vmatpush1.msra.mxu0 0.0
    %217 = vmatprep.subr.mxu0 0.0
    %218 = vmatpush1.msra.mxu0 0.0
    %219 = vmatprep.subr.mxu0 0.0
    %220 = vmatpush1.msra.mxu0 0.0
    %221 = vmatprep.subr.mxu0 0.0
    %222 = vmatpush1.msra.mxu0 0.0
    %223 = vmatprep.subr.mxu0 0.0
    %224 = vmatpush1.msra.mxu0 0.0
    %225 = vmatprep.subr.mxu0 0.0
    %226 = vmatpush1.msra.mxu0 0.0
    %227 = vmatprep.subr.mxu0 0.0
    %228 = vmatpush1.msra.mxu0 0.0
    %229 = vmatprep.mubr.f32.mxu0 0.0
    %230 = vmatmul.mubr.f32.gmra.mrb[0].mxu0 %v159
    %v231 = vpop.f32.mrb[0].mxu0
    %v232 = vadd.f32 0.0, %v231
    %v233 = vpop.f32.mrb[0].mxu0
    %234 = vdwg.mxu0
    %v235 = vadd.f32 %v156, %v232
    %v236 = vxor.u32 %v235, 2147483648
    %v237 = vmul.f32 %v236, 1.442695
    %v238 = vpow.pop %v237
    %v239 = vadd.f32 %v238, 1.0
    %v240 = vrcp.pop %v239
    %v241 = vmul.f32 1.0, %v240
    %v242 = vtanh.pop %v235
    %v243 = vmul.f32 %v241, 0.0
    %245 = vrot.lane.b32.xlu0 %v242, 98
    %v246 = vpop.permute.xlu0 %245
    %v248 = vmul.f32 %v241, %v246
    %250 = vrot.lane.b32.xlu0 %v248, 10
    %v251 = vpop.permute.xlu0 %250
    %v253 = vadd.f32 %v243, %v251
    %v254 = vtanh.pop %v253
    %256 = vrot.lane.b32.xlu0 %v254, 10
    %v257 = vpop.permute.xlu0 %256
    %v259 = vmul.f32 %v241, %v257
    %v261 = vsel %vm161, %v148, 0
    %263 = vmatprep.subr.mxu0 0.0
    %264 = vmatpush1.msra.mxu0 %v147
    %265 = vmatprep.subr.mxu0 0.0
    %266 = vmatpush1.msra.mxu0 %v261
    %267 = vmatprep.subr.mxu0 0.0
    %268 = vmatpush1.msra.mxu0 0.0
    %269 = vmatprep.subr.mxu0 0.0
    %270 = vmatpush1.msra.mxu0 0.0
    %271 = vmatprep.subr.mxu0 0.0
    %272 = vmatpush1.msra.mxu0 0.0
    %273 = vmatprep.subr.mxu0 0.0
    %274 = vmatpush1.msra.mxu0 0.0
    %275 = vmatprep.subr.mxu0 0.0
    %276 = vmatpush1.msra.mxu0 0.0
    %277 = vmatprep.subr.mxu0 0.0
    %278 = vmatpush1.msra.mxu0 0.0
    %279 = vmatprep.subr.mxu0 0.0
    %280 = vmatpush1.msra.mxu0 0.0
    %281 = vmatprep.subr.mxu0 0.0
    %282 = vmatpush1.msra.mxu0 0.0
    %283 = vmatprep.subr.mxu0 0.0
    %284 = vmatpush1.msra.mxu0 0.0
    %285 = vmatprep.subr.mxu0 0.0
    %286 = vmatpush1.msra.mxu0 0.0
    %287 = vmatprep.subr.mxu0 0.0
    %288 = vmatpush1.msra.mxu0 0.0
    %289 = vmatprep.subr.mxu0 0.0
    %290 = vmatpush1.msra.mxu0 0.0
    %291 = vmatprep.subr.mxu0 0.0
    %292 = vmatpush1.msra.mxu0 0.0
    %293 = vmatprep.subr.mxu0 0.0
    %294 = vmatpush1.msra.mxu0 0.0
    %295 = vmatprep.subr.mxu0 0.0
    %296 = vmatpush1.msra.mxu0 0.0
    %297 = vmatprep.subr.mxu0 0.0
    %298 = vmatpush1.msra.mxu0 0.0
    %299 = vmatprep.subr.mxu0 0.0
    %300 = vmatpush1.msra.mxu0 0.0
    %301 = vmatprep.subr.mxu0 0.0
    %302 = vmatpush1.msra.mxu0 0.0
    %303 = vmatprep.subr.mxu0 0.0
    %304 = vmatpush1.msra.mxu0 0.0
    %305 = vmatprep.subr.mxu0 0.0
    %306 = vmatpush1.msra.mxu0 0.0
    %307 = vmatprep.subr.mxu0 0.0
    %308 = vmatpush1.msra.mxu0 0.0
    %309 = vmatprep.subr.mxu0 0.0
    %310 = vmatpush1.msra.mxu0 0.0
    %311 = vmatprep.subr.mxu0 0.0
    %312 = vmatpush1.msra.mxu0 0.0
    %313 = vmatprep.subr.mxu0 0.0
    %314 = vmatpush1.msra.mxu0 0.0
    %315 = vmatprep.subr.mxu0 0.0
    %316 = vmatpush1.msra.mxu0 0.0
    %317 = vmatprep.subr.mxu0 0.0
    %318 = vmatpush1.msra.mxu0 0.0
    %319 = vmatprep.subr.mxu0 0.0
    %320 = vmatpush1.msra.mxu0 0.0
    %321 = vmatprep.subr.mxu0 0.0
    %322 = vmatpush1.msra.mxu0 0.0
    %323 = vmatprep.subr.mxu0 0.0
    %324 = vmatpush1.msra.mxu0 0.0
    %325 = vmatprep.subr.mxu0 0.0
    %326 = vmatpush1.msra.mxu0 0.0
    %327 = vmatprep.mubr.f32.mxu0 0.0
    %328 = vmatmul.mubr.f32.gmra.mrb[0].mxu0 %v159
    %v329 = vpop.f32.mrb[0].mxu0
    %v330 = vadd.f32 0.0, %v329
    %v331 = vpop.f32.mrb[0].mxu0
    %332 = vdwg.mxu0
    %334 = vrot.lane.b32.xlu0 %v259, 108
    %v335 = vpop.permute.xlu0 %334
    %v336 = vsel %vm157, %v335, 0
    %v339 = vsel %vm161, %v146, 0
    %341 = vmatprep.subr.mxu0 0.0
    %342 = vmatpush1.msra.mxu0 %v145
    %343 = vmatprep.subr.mxu0 0.0
    %344 = vmatpush1.msra.mxu0 %v339
    %345 = vmatprep.subr.mxu0 0.0
    %346 = vmatpush1.msra.mxu0 0.0
    %347 = vmatprep.subr.mxu0 0.0
    %348 = vmatpush1.msra.mxu0 0.0
    %349 = vmatprep.subr.mxu0 0.0
    %350 = vmatpush1.msra.mxu0 0.0
    %351 = vmatprep.subr.mxu0 0.0
    %352 = vmatpush1.msra.mxu0 0.0
    %353 = vmatprep.subr.mxu0 0.0
    %354 = vmatpush1.msra.mxu0 0.0
    %355 = vmatprep.subr.mxu0 0.0
    %356 = vmatpush1.msra.mxu0 0.0
    %357 = vmatprep.subr.mxu0 0.0
    %358 = vmatpush1.msra.mxu0 0.0
    %359 = vmatprep.subr.mxu0 0.0
    %360 = vmatpush1.msra.mxu0 0.0
    %361 = vmatprep.subr.mxu0 0.0
    %362 = vmatpush1.msra.mxu0 0.0
    %363 = vmatprep.subr.mxu0 0.0
    %364 = vmatpush1.msra.mxu0 0.0
    %365 = vmatprep.subr.mxu0 0.0
    %366 = vmatpush1.msra.mxu0 0.0
    %367 = vmatprep.subr.mxu0 0.0
    %368 = vmatpush1.msra.mxu0 0.0
    %369 = vmatprep.subr.mxu0 0.0
    %370 = vmatpush1.msra.mxu0 0.0
    %371 = vmatprep.subr.mxu0 0.0
    %372 = vmatpush1.msra.mxu0 0.0
    %373 = vmatprep.subr.mxu0 0.0
    %374 = vmatpush1.msra.mxu0 0.0
    %375 = vmatprep.subr.mxu0 0.0
    %376 = vmatpush1.msra.mxu0 0.0
    %377 = vmatprep.subr.mxu0 0.0
    %378 = vmatpush1.msra.mxu0 0.0
    %379 = vmatprep.subr.mxu0 0.0
    %380 = vmatpush1.msra.mxu0 0.0
    %381 = vmatprep.subr.mxu0 0.0
    %382 = vmatpush1.msra.mxu0 0.0
    %383 = vmatprep.subr.mxu0 0.0
    %384 = vmatpush1.msra.mxu0 0.0
    %385 = vmatprep.subr.mxu0 0.0
    %386 = vmatpush1.msra.mxu0 0.0
    %387 = vmatprep.subr.mxu0 0.0
    %388 = vmatpush1.msra.mxu0 0.0
    %389 = vmatprep.subr.mxu0 0.0
    %390 = vmatpush1.msra.mxu0 0.0
    %391 = vmatprep.subr.mxu0 0.0
    %392 = vmatpush1.msra.mxu0 0.0
    %393 = vmatprep.subr.mxu0 0.0
    %394 = vmatpush1.msra.mxu0 0.0
    %395 = vmatprep.subr.mxu0 0.0
    %396 = vmatpush1.msra.mxu0 0.0
    %397 = vmatprep.subr.mxu0 0.0
    %398 = vmatpush1.msra.mxu0 0.0
    %399 = vmatprep.subr.mxu0 0.0
    %400 = vmatpush1.msra.mxu0 0.0
    %401 = vmatprep.subr.mxu0 0.0
    %402 = vmatpush1.msra.mxu0 0.0
    %403 = vmatprep.subr.mxu0 0.0
    %404 = vmatpush1.msra.mxu0 0.0
    %405 = vmatprep.mubr.f32.mxu0 0.0
    %406 = vmatmul.mubr.f32.gmra.mrb[0].mxu0 %v336
    %v407 = vpop.f32.mrb[0].mxu0
    %v408 = vadd.f32 %v330, %v407
    %v409 = vpop.f32.mrb[0].mxu0
    %410 = vdwg.mxu0
    %v411 = vadd.f32 %v408, %v154
    %v412 = vxor.u32 %v411, 2147483648
    %v413 = vmul.f32 %v412, 1.442695
    %v414 = vpow.pop %v413
    %v415 = vadd.f32 %v414, 1.0
    %v416 = vrcp.pop %v415
    %v417 = vmul.f32 1.0, %v416
    %v418 = vtanh.pop %v411
    %v419 = vmul.f32 %v417, 0.0
    %421 = vrot.lane.b32.xlu0 %v418, 98
    %v422 = vpop.permute.xlu0 %421
    %v424 = vmul.f32 %v417, %v422
    %426 = vrot.lane.b32.xlu0 %v424, 10
    %v427 = vpop.permute.xlu0 %426
    %v429 = vadd.f32 %v419, %v427
    %v430 = vtanh.pop %v429
    %432 = vrot.lane.b32.xlu0 %v430, 10
    %v433 = vpop.permute.xlu0 %432
    %v435 = vmul.f32 %v417, %v433
    %s436 = scalar_lea.vmem [#allocation2], 2
    %v437 = vld [vmem:[%s436] sm:$0x3]
    %438 = vmatprep.subr.mxu0 0.0
    %439 = vmatpush1.msra.mxu0 %v143
    %440 = vmatprep.subr.mxu0 0.0
    %441 = vmatpush1.msra.mxu0 %v163
    %442 = vmatprep.subr.mxu0 0.0
    %443 = vmatpush1.msra.mxu0 0.0
    %444 = vmatprep.subr.mxu0 0.0
    %445 = vmatpush1.msra.mxu0 0.0
    %446 = vmatprep.subr.mxu0 0.0
    %447 = vmatpush1.msra.mxu0 0.0
    %448 = vmatprep.subr.mxu0 0.0
    %449 = vmatpush1.msra.mxu0 0.0
    %450 = vmatprep.subr.mxu0 0.0
    %451 = vmatpush1.msra.mxu0 0.0
    %452 = vmatprep.subr.mxu0 0.0
    %453 = vmatpush1.msra.mxu0 0.0
    %454 = vmatprep.subr.mxu0 0.0
    %455 = vmatpush1.msra.mxu0 0.0
    %456 = vmatprep.subr.mxu0 0.0
    %457 = vmatpush1.msra.mxu0 0.0
    %458 = vmatprep.subr.mxu0 0.0
    %459 = vmatpush1.msra.mxu0 0.0
    %460 = vmatprep.subr.mxu0 0.0
    %461 = vmatpush1.msra.mxu0 0.0
    %462 = vmatprep.subr.mxu0 0.0
    %463 = vmatpush1.msra.mxu0 0.0
    %464 = vmatprep.subr.mxu0 0.0
    %465 = vmatpush1.msra.mxu0 0.0
    %466 = vmatprep.subr.mxu0 0.0
    %467 = vmatpush1.msra.mxu0 0.0
    %468 = vmatprep.subr.mxu0 0.0
    %469 = vmatpush1.msra.mxu0 0.0
    %470 = vmatprep.subr.mxu0 0.0
    %471 = vmatpush1.msra.mxu0 0.0
    %472 = vmatprep.subr.mxu0 0.0
    %473 = vmatpush1.msra.mxu0 0.0
    %474 = vmatprep.subr.mxu0 0.0
    %475 = vmatpush1.msra.mxu0 0.0
    %476 = vmatprep.subr.mxu0 0.0
    %477 = vmatpush1.msra.mxu0 0.0
    %478 = vmatprep.subr.mxu0 0.0
    %479 = vmatpush1.msra.mxu0 0.0
    %480 = vmatprep.subr.mxu0 0.0
    %481 = vmatpush1.msra.mxu0 0.0
    %482 = vmatprep.subr.mxu0 0.0
    %483 = vmatpush1.msra.mxu0 0.0
    %484 = vmatprep.subr.mxu0 0.0
    %485 = vmatpush1.msra.mxu0 0.0
    %486 = vmatprep.subr.mxu0 0.0
    %487 = vmatpush1.msra.mxu0 0.0
    %488 = vmatprep.subr.mxu0 0.0
    %489 = vmatpush1.msra.mxu0 0.0
    %490 = vmatprep.subr.mxu0 0.0
    %491 = vmatpush1.msra.mxu0 0.0
    %492 = vmatprep.subr.mxu0 0.0
    %493 = vmatpush1.msra.mxu0 0.0
    %494 = vmatprep.subr.mxu0 0.0
    %495 = vmatpush1.msra.mxu0 0.0
    %496 = vmatprep.subr.mxu0 0.0
    %497 = vmatpush1.msra.mxu0 0.0
    %498 = vmatprep.subr.mxu0 0.0
    %499 = vmatpush1.msra.mxu0 0.0
    %500 = vmatprep.subr.mxu0 0.0
    %501 = vmatpush1.msra.mxu0 0.0
    %502 = vmatprep.mubr.f32.mxu0 0.0
    %503 = vmatmul.mubr.f32.gmra.mrb[0].mxu0 %v336
    %v504 = vpop.f32.mrb[0].mxu0
    %v505 = vadd.f32 0.0, %v504
    %v506 = vpop.f32.mrb[0].mxu0
    %507 = vdwg.mxu0
    %v508 = vadd.f32 %v437, %v505
    %v509 = vxor.u32 %v508, 2147483648
    %v510 = vmul.f32 %v509, 1.442695
    %v511 = vpow.pop %v510
    %v512 = vadd.f32 %v511, 1.0
    %v513 = vrcp.pop %v512
    %v514 = vmul.f32 1.0, %v513
    %v515 = vtanh.pop %v508
    %v516 = vmul.f32 %v514, %v253
    %518 = vrot.lane.b32.xlu0 %v515, 98
    %v519 = vpop.permute.xlu0 %518
    %v521 = vmul.f32 %v514, %v519
    %523 = vrot.lane.b32.xlu0 %v521, 10
    %v524 = vpop.permute.xlu0 %523
    %v526 = vadd.f32 %v516, %v524
    %v527 = vtanh.pop %v526
    %529 = vrot.lane.b32.xlu0 %v527, 10
    %v530 = vpop.permute.xlu0 %529
    %v532 = vmul.f32 %v514, %v530
    %534 = vrot.lane.b32.xlu0 %v435, 108
    %v535 = vpop.permute.xlu0 %534
    %v536 = vsel %vm157, %v535, 0
    %538 = vmatprep.subr.mxu0 0.0
    %539 = vmatpush1.msra.mxu0 %v147
    %540 = vmatprep.subr.mxu0 0.0
    %541 = vmatpush1.msra.mxu0 %v261
    %542 = vmatprep.subr.mxu0 0.0
    %543 = vmatpush1.msra.mxu0 0.0
    %544 = vmatprep.subr.mxu0 0.0
    %545 = vmatpush1.msra.mxu0 0.0
    %546 = vmatprep.subr.mxu0 0.0
    %547 = vmatpush1.msra.mxu0 0.0
    %548 = vmatprep.subr.mxu0 0.0
    %549 = vmatpush1.msra.mxu0 0.0
    %550 = vmatprep.subr.mxu0 0.0
    %551 = vmatpush1.msra.mxu0 0.0
    %552 = vmatprep.subr.mxu0 0.0
    %553 = vmatpush1.msra.mxu0 0.0
    %554 = vmatprep.subr.mxu0 0.0
    %555 = vmatpush1.msra.mxu0 0.0
    %556 = vmatprep.subr.mxu0 0.0
    %557 = vmatpush1.msra.mxu0 0.0
    %558 = vmatprep.subr.mxu0 0.0
    %559 = vmatpush1.msra.mxu0 0.0
    %560 = vmatprep.subr.mxu0 0.0
    %561 = vmatpush1.msra.mxu0 0.0
    %562 = vmatprep.subr.mxu0 0.0
    %563 = vmatpush1.msra.mxu0 0.0
    %564 = vmatprep.subr.mxu0 0.0
    %565 = vmatpush1.msra.mxu0 0.0
    %566 = vmatprep.subr.mxu0 0.0
    %567 = vmatpush1.msra.mxu0 0.0
    %568 = vmatprep.subr.mxu0 0.0
    %569 = vmatpush1.msra.mxu0 0.0
    %570 = vmatprep.subr.mxu0 0.0
    %571 = vmatpush1.msra.mxu0 0.0
    %572 = vmatprep.subr.mxu0 0.0
    %573 = vmatpush1.msra.mxu0 0.0
    %574 = vmatprep.subr.mxu0 0.0
    %575 = vmatpush1.msra.mxu0 0.0
    %576 = vmatprep.subr.mxu0 0.0
    %577 = vmatpush1.msra.mxu0 0.0
    %578 = vmatprep.subr.mxu0 0.0
    %579 = vmatpush1.msra.mxu0 0.0
    %580 = vmatprep.subr.mxu0 0.0
    %581 = vmatpush1.msra.mxu0 0.0
    %582 = vmatprep.subr.mxu0 0.0
    %583 = vmatpush1.msra.mxu0 0.0
    %584 = vmatprep.subr.mxu0 0.0
    %585 = vmatpush1.msra.mxu0 0.0
    %586 = vmatprep.subr.mxu0 0.0
    %587 = vmatpush1.msra.mxu0 0.0
    %588 = vmatprep.subr.mxu0 0.0
    %589 = vmatpush1.msra.mxu0 0.0
    %590 = vmatprep.subr.mxu0 0.0
    %591 = vmatpush1.msra.mxu0 0.0
    %592 = vmatprep.subr.mxu0 0.0
    %593 = vmatpush1.msra.mxu0 0.0
    %594 = vmatprep.subr.mxu0 0.0
    %595 = vmatpush1.msra.mxu0 0.0
    %596 = vmatprep.subr.mxu0 0.0
    %597 = vmatpush1.msra.mxu0 0.0
    %598 = vmatprep.subr.mxu0 0.0
    %599 = vmatpush1.msra.mxu0 0.0
    %600 = vmatprep.subr.mxu0 0.0
    %601 = vmatpush1.msra.mxu0 0.0
    %602 = vmatprep.mubr.f32.mxu0 0.0
    %603 = vmatmul.mubr.f32.gmra.mrb[0].mxu0 %v536
    %v604 = vpop.f32.mrb[0].mxu0
    %v605 = vadd.f32 0.0, %v604
    %v606 = vpop.f32.mrb[0].mxu0
    %607 = vdwg.mxu0
    %609 = vrot.lane.b32.xlu0 %v532, 108
    %v610 = vpop.permute.xlu0 %609
    %v611 = vsel %vm157, %v610, 0
    %613 = vmatprep.subr.mxu0 0.0
    %614 = vmatpush1.msra.mxu0 %v145
    %615 = vmatprep.subr.mxu0 0.0
    %616 = vmatpush1.msra.mxu0 %v339
    %617 = vmatprep.subr.mxu0 0.0
    %618 = vmatpush1.msra.mxu0 0.0
    %619 = vmatprep.subr.mxu0 0.0
    %620 = vmatpush1.msra.mxu0 0.0
    %621 = vmatprep.subr.mxu0 0.0
    %622 = vmatpush1.msra.mxu0 0.0
    %623 = vmatprep.subr.mxu0 0.0
    %624 = vmatpush1.msra.mxu0 0.0
    %625 = vmatprep.subr.mxu0 0.0
    %626 = vmatpush1.msra.mxu0 0.0
    %627 = vmatprep.subr.mxu0 0.0
    %628 = vmatpush1.msra.mxu0 0.0
    %629 = vmatprep.subr.mxu0 0.0
    %630 = vmatpush1.msra.mxu0 0.0
    %631 = vmatprep.subr.mxu0 0.0
    %632 = vmatpush1.msra.mxu0 0.0
    %633 = vmatprep.subr.mxu0 0.0
    %634 = vmatpush1.msra.mxu0 0.0
    %635 = vmatprep.subr.mxu0 0.0
    %636 = vmatpush1.msra.mxu0 0.0
    %637 = vmatprep.subr.mxu0 0.0
    %638 = vmatpush1.msra.mxu0 0.0
    %639 = vmatprep.subr.mxu0 0.0
    %640 = vmatpush1.msra.mxu0 0.0
    %641 = vmatprep.subr.mxu0 0.0
    %642 = vmatpush1.msra.mxu0 0.0
    %643 = vmatprep.subr.mxu0 0.0
    %644 = vmatpush1.msra.mxu0 0.0
    %645 = vmatprep.subr.mxu0 0.0
    %646 = vmatpush1.msra.mxu0 0.0
    %647 = vmatprep.subr.mxu0 0.0
    %648 = vmatpush1.msra.mxu0 0.0
    %649 = vmatprep.subr.mxu0 0.0
    %650 = vmatpush1.msra.mxu0 0.0
    %651 = vmatprep.subr.mxu0 0.0
    %652 = vmatpush1.msra.mxu0 0.0
    %653 = vmatprep.subr.mxu0 0.0
    %654 = vmatpush1.msra.mxu0 0.0
    %655 = vmatprep.subr.mxu0 0.0
    %656 = vmatpush1.msra.mxu0 0.0
    %657 = vmatprep.subr.mxu0 0.0
    %658 = vmatpush1.msra.mxu0 0.0
    %659 = vmatprep.subr.mxu0 0.0
    %660 = vmatpush1.msra.mxu0 0.0
    %661 = vmatprep.subr.mxu0 0.0
    %662 = vmatpush1.msra.mxu0 0.0
    %663 = vmatprep.subr.mxu0 0.0
    %664 = vmatpush1.msra.mxu0 0.0
    %665 = vmatprep.subr.mxu0 0.0
    %666 = vmatpush1.msra.mxu0 0.0
    %667 = vmatprep.subr.mxu0 0.0
    %668 = vmatpush1.msra.mxu0 0.0
    %669 = vmatprep.subr.mxu0 0.0
    %670 = vmatpush1.msra.mxu0 0.0
    %671 = vmatprep.subr.mxu0 0.0
    %672 = vmatpush1.msra.mxu0 0.0
    %673 = vmatprep.subr.mxu0 0.0
    %674 = vmatpush1.msra.mxu0 0.0
    %675 = vmatprep.subr.mxu0 0.0
    %676 = vmatpush1.msra.mxu0 0.0
    %677 = vmatprep.mubr.f32.mxu0 0.0
    %678 = vmatmul.mubr.f32.gmra.mrb[0].mxu0 %v611
    %v679 = vpop.f32.mrb[0].mxu0
    %v680 = vadd.f32 %v605, %v679
    %v681 = vpop.f32.mrb[0].mxu0
    %682 = vdwg.mxu0
    %v683 = vadd.f32 %v680, %v154
    %v684 = vxor.u32 %v683, 2147483648
    %v685 = vmul.f32 %v684, 1.442695
    %v686 = vpow.pop %v685
    %v687 = vadd.f32 %v686, 1.0
    %v688 = vrcp.pop %v687
    %v689 = vmul.f32 1.0, %v688
    %v690 = vtanh.pop %v683
    %v691 = vmul.f32 %v689, %v429
    %693 = vrot.lane.b32.xlu0 %v690, 98
    %v694 = vpop.permute.xlu0 %693
    %v696 = vmul.f32 %v689, %v694
    %698 = vrot.lane.b32.xlu0 %v696, 10
    %v699 = vpop.permute.xlu0 %698
    %v701 = vadd.f32 %v691, %v699
    %v702 = vtanh.pop %v701
    %704 = vrot.lane.b32.xlu0 %v702, 10
    %v705 = vpop.permute.xlu0 %704
    %v707 = vmul.f32 %v689, %v705
    %s708 = scalar_lea.vmem [#allocation2], 4
    %v709 = vld [vmem:[%s708] sm:$0x3]
    %710 = vmatprep.subr.mxu0 0.0
    %711 = vmatpush1.msra.mxu0 %v143
    %712 = vmatprep.subr.mxu0 0.0
    %713 = vmatpush1.msra.mxu0 %v163
    %714 = vmatprep.subr.mxu0 0.0
    %715 = vmatpush1.msra.mxu0 0.0
    %716 = vmatprep.subr.mxu0 0.0
    %717 = vmatpush1.msra.mxu0 0.0
    %718 = vmatprep.subr.mxu0 0.0
    %719 = vmatpush1.msra.mxu0 0.0
    %720 = vmatprep.subr.mxu0 0.0
    %721 = vmatpush1.msra.mxu0 0.0
    %722 = vmatprep.subr.mxu0 0.0
    %723 = vmatpush1.msra.mxu0 0.0
    %724 = vmatprep.subr.mxu0 0.0
    %725 = vmatpush1.msra.mxu0 0.0
    %726 = vmatprep.subr.mxu0 0.0
    %727 = vmatpush1.msra.mxu0 0.0
    %728 = vmatprep.subr.mxu0 0.0
    %729 = vmatpush1.msra.mxu0 0.0
    %730 = vmatprep.subr.mxu0 0.0
    %731 = vmatpush1.msra.mxu0 0.0
    %732 = vmatprep.subr.mxu0 0.0
    %733 = vmatpush1.msra.mxu0 0.0
    %734 = vmatprep.subr.mxu0 0.0
    %735 = vmatpush1.msra.mxu0 0.0
    %736 = vmatprep.subr.mxu0 0.0
    %737 = vmatpush1.msra.mxu0 0.0
    %738 = vmatprep.subr.mxu0 0.0
    %739 = vmatpush1.msra.mxu0 0.0
    %740 = vmatprep.subr.mxu0 0.0
    %741 = vmatpush1.msra.mxu0 0.0
    %742 = vmatprep.subr.mxu0 0.0
    %743 = vmatpush1.msra.mxu0 0.0
    %744 = vmatprep.subr.mxu0 0.0
    %745 = vmatpush1.msra.mxu0 0.0
    %746 = vmatprep.subr.mxu0 0.0
    %747 = vmatpush1.msra.mxu0 0.0
    %748 = vmatprep.subr.mxu0 0.0
    %749 = vmatpush1.msra.mxu0 0.0
    %750 = vmatprep.subr.mxu0 0.0
    %751 = vmatpush1.msra.mxu0 0.0
    %752 = vmatprep.subr.mxu0 0.0
    %753 = vmatpush1.msra.mxu0 0.0
    %754 = vmatprep.subr.mxu0 0.0
    %755 = vmatpush1.msra.mxu0 0.0
    %756 = vmatprep.subr.mxu0 0.0
    %757 = vmatpush1.msra.mxu0 0.0
    %758 = vmatprep.subr.mxu0 0.0
    %759 = vmatpush1.msra.mxu0 0.0
    %760 = vmatprep.subr.mxu0 0.0
    %761 = vmatpush1.msra.mxu0 0.0
    %762 = vmatprep.subr.mxu0 0.0
    %763 = vmatpush1.msra.mxu0 0.0
    %764 = vmatprep.subr.mxu0 0.0
    %765 = vmatpush1.msra.mxu0 0.0
    %766 = vmatprep.subr.mxu0 0.0
    %767 = vmatpush1.msra.mxu0 0.0
    %768 = vmatprep.subr.mxu0 0.0
    %769 = vmatpush1.msra.mxu0 0.0
    %770 = vmatprep.subr.mxu0 0.0
    %771 = vmatpush1.msra.mxu0 0.0
    %772 = vmatprep.subr.mxu0 0.0
    %773 = vmatpush1.msra.mxu0 0.0
    %774 = vmatprep.mubr.f32.mxu0 0.0
    %775 = vmatmul.mubr.f32.gmra.mrb[0].mxu0 %v611
    %v776 = vpop.f32.mrb[0].mxu0
    %v777 = vadd.f32 0.0, %v776
    %v778 = vpop.f32.mrb[0].mxu0
    %779 = vdwg.mxu0
    %v780 = vadd.f32 %v709, %v777
    %v781 = vxor.u32 %v780, 2147483648
    %v782 = vmul.f32 %v781, 1.442695
    %v783 = vpow.pop %v782
    %v784 = vadd.f32 %v783, 1.0
    %v785 = vrcp.pop %v784
    %v786 = vmul.f32 1.0, %v785
    %v787 = vtanh.pop %v780
    %v788 = vmul.f32 %v786, %v526
    %790 = vrot.lane.b32.xlu0 %v787, 98
    %v791 = vpop.permute.xlu0 %790
    %v793 = vmul.f32 %v786, %v791
    %795 = vrot.lane.b32.xlu0 %v793, 10
    %v796 = vpop.permute.xlu0 %795
    %v798 = vadd.f32 %v788, %v796
    %v799 = vtanh.pop %v798
    %801 = vrot.lane.b32.xlu0 %v799, 10
    %v802 = vpop.permute.xlu0 %801
    %v804 = vmul.f32 %v786, %v802
    %806 = vrot.lane.b32.xlu0 %v707, 108
    %v807 = vpop.permute.xlu0 %806
    %v808 = vsel %vm157, %v807, 0
    %810 = vmatprep.subr.mxu0 0.0
    %811 = vmatpush1.msra.mxu0 %v147
    %812 = vmatprep.subr.mxu0 0.0
    %813 = vmatpush1.msra.mxu0 %v261
    %814 = vmatprep.subr.mxu0 0.0
    %815 = vmatpush1.msra.mxu0 0.0
    %816 = vmatprep.subr.mxu0 0.0
    %817 = vmatpush1.msra.mxu0 0.0
    %818 = vmatprep.subr.mxu0 0.0
    %819 = vmatpush1.msra.mxu0 0.0
    %820 = vmatprep.subr.mxu0 0.0
    %821 = vmatpush1.msra.mxu0 0.0
    %822 = vmatprep.subr.mxu0 0.0
    %823 = vmatpush1.msra.mxu0 0.0
    %824 = vmatprep.subr.mxu0 0.0
    %825 = vmatpush1.msra.mxu0 0.0
    %826 = vmatprep.subr.mxu0 0.0
    %827 = vmatpush1.msra.mxu0 0.0
    %828 = vmatprep.subr.mxu0 0.0
    %829 = vmatpush1.msra.mxu0 0.0
    %830 = vmatprep.subr.mxu0 0.0
    %831 = vmatpush1.msra.mxu0 0.0
    %832 = vmatprep.subr.mxu0 0.0
    %833 = vmatpush1.msra.mxu0 0.0
    %834 = vmatprep.subr.mxu0 0.0
    %835 = vmatpush1.msra.mxu0 0.0
    %836 = vmatprep.subr.mxu0 0.0
    %837 = vmatpush1.msra.mxu0 0.0
    %838 = vmatprep.subr.mxu0 0.0
    %839 = vmatpush1.msra.mxu0 0.0
    %840 = vmatprep.subr.mxu0 0.0
    %841 = vmatpush1.msra.mxu0 0.0
    %842 = vmatprep.subr.mxu0 0.0
    %843 = vmatpush1.msra.mxu0 0.0
    %844 = vmatprep.subr.mxu0 0.0
    %845 = vmatpush1.msra.mxu0 0.0
    %846 = vmatprep.subr.mxu0 0.0
    %847 = vmatpush1.msra.mxu0 0.0
    %848 = vmatprep.subr.mxu0 0.0
    %849 = vmatpush1.msra.mxu0 0.0
    %850 = vmatprep.subr.mxu0 0.0
    %851 = vmatpush1.msra.mxu0 0.0
    %852 = vmatprep.subr.mxu0 0.0
    %853 = vmatpush1.msra.mxu0 0.0
    %854 = vmatprep.subr.mxu0 0.0
    %855 = vmatpush1.msra.mxu0 0.0
    %856 = vmatprep.subr.mxu0 0.0
    %857 = vmatpush1.msra.mxu0 0.0
    %858 = vmatprep.subr.mxu0 0.0
    %859 = vmatpush1.msra.mxu0 0.0
    %860 = vmatprep.subr.mxu0 0.0
    %861 = vmatpush1.msra.mxu0 0.0
    %862 = vmatprep.subr.mxu0 0.0
    %863 = vmatpush1.msra.mxu0 0.0
    %864 = vmatprep.subr.mxu0 0.0
    %865 = vmatpush1.msra.mxu0 0.0
    %866 = vmatprep.subr.mxu0 0.0
    %867 = vmatpush1.msra.mxu0 0.0
    %868 = vmatprep.subr.mxu0 0.0
    %869 = vmatpush1.msra.mxu0 0.0
    %870 = vmatprep.subr.mxu0 0.0
    %871 = vmatpush1.msra.mxu0 0.0
    %872 = vmatprep.subr.mxu0 0.0
    %873 = vmatpush1.msra.mxu0 0.0
    %874 = vmatprep.mubr.f32.mxu0 0.0
    %875 = vmatmul.mubr.f32.gmra.mrb[0].mxu0 %v808
    %v876 = vpop.f32.mrb[0].mxu0
    %v877 = vadd.f32 0.0, %v876
    %v878 = vpop.f32.mrb[0].mxu0
    %879 = vdwg.mxu0
    %881 = vrot.lane.b32.xlu0 %v804, 108
    %v882 = vpop.permute.xlu0 %881
    %v883 = vsel %vm157, %v882, 0
    %885 = vmatprep.subr.mxu0 0.0
    %886 = vmatpush1.msra.mxu0 %v145
    %887 = vmatprep.subr.mxu0 0.0
    %888 = vmatpush1.msra.mxu0 %v339
    %889 = vmatprep.subr.mxu0 0.0
    %890 = vmatpush1.msra.mxu0 0.0
    %891 = vmatprep.subr.mxu0 0.0
    %892 = vmatpush1.msra.mxu0 0.0
    %893 = vmatprep.subr.mxu0 0.0
    %894 = vmatpush1.msra.mxu0 0.0
    %895 = vmatprep.subr.mxu0 0.0
    %896 = vmatpush1.msra.mxu0 0.0
    %897 = vmatprep.subr.mxu0 0.0
    %898 = vmatpush1.msra.mxu0 0.0
    %899 = vmatprep.subr.mxu0 0.0
    %900 = vmatpush1.msra.mxu0 0.0
    %901 = vmatprep.subr.mxu0 0.0
    %902 = vmatpush1.msra.mxu0 0.0
    %903 = vmatprep.subr.mxu0 0.0
    %904 = vmatpush1.msra.mxu0 0.0
    %905 = vmatprep.subr.mxu0 0.0
    %906 = vmatpush1.msra.mxu0 0.0
    %907 = vmatprep.subr.mxu0 0.0
    %908 = vmatpush1.msra.mxu0 0.0
    %909 = vmatprep.subr.mxu0 0.0
    %910 = vmatpush1.msra.mxu0 0.0
    %911 = vmatprep.subr.mxu0 0.0
    %912 = vmatpush1.msra.mxu0 0.0
    %913 = vmatprep.subr.mxu0 0.0
    %914 = vmatpush1.msra.mxu0 0.0
    %915 = vmatprep.subr.mxu0 0.0
    %916 = vmatpush1.msra.mxu0 0.0
    %917 = vmatprep.subr.mxu0 0.0
    %918 = vmatpush1.msra.mxu0 0.0
    %919 = vmatprep.subr.mxu0 0.0
    %920 = vmatpush1.msra.mxu0 0.0
    %921 = vmatprep.subr.mxu0 0.0
    %922 = vmatpush1.msra.mxu0 0.0
    %923 = vmatprep.subr.mxu0 0.0
    %924 = vmatpush1.msra.mxu0 0.0
    %925 = vmatprep.subr.mxu0 0.0
    %926 = vmatpush1.msra.mxu0 0.0
    %927 = vmatprep.subr.mxu0 0.0
    %928 = vmatpush1.msra.mxu0 0.0
    %929 = vmatprep.subr.mxu0 0.0
    %930 = vmatpush1.msra.mxu0 0.0
    %931 = vmatprep.subr.mxu0 0.0
    %932 = vmatpush1.msra.mxu0 0.0
    %933 = vmatprep.subr.mxu0 0.0
    %934 = vmatpush1.msra.mxu0 0.0
    %935 = vmatprep.subr.mxu0 0.0
    %936 = vmatpush1.msra.mxu0 0.0
    %937 = vmatprep.subr.mxu0 0.0
    %938 = vmatpush1.msra.mxu0 0.0
    %939 = vmatprep.subr.mxu0 0.0
    %940 = vmatpush1.msra.mxu0 0.0
    %941 = vmatprep.subr.mxu0 0.0
    %942 = vmatpush1.msra.mxu0 0.0
    %943 = vmatprep.subr.mxu0 0.0
    %944 = vmatpush1.msra.mxu0 0.0
    %945 = vmatprep.subr.mxu0 0.0
    %946 = vmatpush1.msra.mxu0 0.0
    %947 = vmatprep.subr.mxu0 0.0
    %948 = vmatpush1.msra.mxu0 0.0
    %949 = vmatprep.mubr.f32.mxu0 0.0
    %950 = vmatmul.mubr.f32.gmra.mrb[0].mxu0 %v883
    %v951 = vpop.f32.mrb[0].mxu0
    %v952 = vadd.f32 %v877, %v951
    %v953 = vpop.f32.mrb[0].mxu0
    %954 = vdwg.mxu0
    %v955 = vadd.f32 %v952, %v154
    %v956 = vxor.u32 %v955, 2147483648
    %v957 = vmul.f32 %v956, 1.442695
    %v958 = vpow.pop %v957
    %v959 = vadd.f32 %v958, 1.0
    %v960 = vrcp.pop %v959
    %v961 = vmul.f32 1.0, %v960
    %v962 = vtanh.pop %v955
    %v963 = vmul.f32 %v961, %v701
    %965 = vrot.lane.b32.xlu0 %v962, 98
    %v966 = vpop.permute.xlu0 %965
    %v968 = vmul.f32 %v961, %v966
    %970 = vrot.lane.b32.xlu0 %v968, 10
    %v971 = vpop.permute.xlu0 %970
    %v973 = vadd.f32 %v963, %v971
    %v974 = vtanh.pop %v973
    %976 = vrot.lane.b32.xlu0 %v974, 10
    %v977 = vpop.permute.xlu0 %976
    %v979 = vmul.f32 %v961, %v977
    %s980 = scalar_lea.vmem [#allocation2], 6
    %v981 = vld [vmem:[%s980] sm:$0x3]
    %982 = vmatprep.subr.mxu0 0.0
    %983 = vmatpush1.msra.mxu0 %v143
    %984 = vmatprep.subr.mxu0 0.0
    %985 = vmatpush1.msra.mxu0 %v163
    %986 = vmatprep.subr.mxu0 0.0
    %987 = vmatpush1.msra.mxu0 0.0
    %988 = vmatprep.subr.mxu0 0.0
    %989 = vmatpush1.msra.mxu0 0.0
    %990 = vmatprep.subr.mxu0 0.0
    %991 = vmatpush1.msra.mxu0 0.0
    %992 = vmatprep.subr.mxu0 0.0
    %993 = vmatpush1.msra.mxu0 0.0
    %994 = vmatprep.subr.mxu0 0.0
    %995 = vmatpush1.msra.mxu0 0.0
    %996 = vmatprep.subr.mxu0 0.0
    %997 = vmatpush1.msra.mxu0 0.0
    %998 = vmatprep.subr.mxu0 0.0
    %999 = vmatpush1.msra.mxu0 0.0
    %1000 = vmatprep.subr.mxu0 0.0
    %1001 = vmatpush1.msra.mxu0 0.0
    %1002 = vmatprep.subr.mxu0 0.0
    %1003 = vmatpush1.msra.mxu0 0.0
    %1004 = vmatprep.subr.mxu0 0.0
    %1005 = vmatpush1.msra.mxu0 0.0
    %1006 = vmatprep.subr.mxu0 0.0
    %1007 = vmatpush1.msra.mxu0 0.0
    %1008 = vmatprep.subr.mxu0 0.0
    %1009 = vmatpush1.msra.mxu0 0.0
    %1010 = vmatprep.subr.mxu0 0.0
    %1011 = vmatpush1.msra.mxu0 0.0
    %1012 = vmatprep.subr.mxu0 0.0
    %1013 = vmatpush1.msra.mxu0 0.0
    %1014 = vmatprep.subr.mxu0 0.0
    %1015 = vmatpush1.msra.mxu0 0.0
    %1016 = vmatprep.subr.mxu0 0.0
    %1017 = vmatpush1.msra.mxu0 0.0
    %1018 = vmatprep.subr.mxu0 0.0
    %1019 = vmatpush1.msra.mxu0 0.0
    %1020 = vmatprep.subr.mxu0 0.0
    %1021 = vmatpush1.msra.mxu0 0.0
    %1022 = vmatprep.subr.mxu0 0.0
    %1023 = vmatpush1.msra.mxu0 0.0
    %1024 = vmatprep.subr.mxu0 0.0
    %1025 = vmatpush1.msra.mxu0 0.0
    %1026 = vmatprep.subr.mxu0 0.0
    %1027 = vmatpush1.msra.mxu0 0.0
    %1028 = vmatprep.subr.mxu0 0.0
    %1029 = vmatpush1.msra.mxu0 0.0
    %1030 = vmatprep.subr.mxu0 0.0
    %1031 = vmatpush1.msra.mxu0 0.0
    %1032 = vmatprep.subr.mxu0 0.0
    %1033 = vmatpush1.msra.mxu0 0.0
    %1034 = vmatprep.subr.mxu0 0.0
    %1035 = vmatpush1.msra.mxu0 0.0
    %1036 = vmatprep.subr.mxu0 0.0
    %1037 = vmatpush1.msra.mxu0 0.0
    %1038 = vmatprep.subr.mxu0 0.0
    %1039 = vmatpush1.msra.mxu0 0.0
    %1040 = vmatprep.subr.mxu0 0.0
    %1041 = vmatpush1.msra.mxu0 0.0
    %1042 = vmatprep.subr.mxu0 0.0
    %1043 = vmatpush1.msra.mxu0 0.0
    %1044 = vmatprep.subr.mxu0 0.0
    %1045 = vmatpush1.msra.mxu0 0.0
    %1046 = vmatprep.mubr.f32.mxu0 0.0
    %1047 = vmatmul.mubr.f32.gmra.mrb[0].mxu0 %v883
    %v1048 = vpop.f32.mrb[0].mxu0
    %v1049 = vadd.f32 0.0, %v1048
    %v1050 = vpop.f32.mrb[0].mxu0
    %1051 = vdwg.mxu0
    %v1052 = vadd.f32 %v981, %v1049
    %v1053 = vxor.u32 %v1052, 2147483648
    %v1054 = vmul.f32 %v1053, 1.442695
    %v1055 = vpow.pop %v1054
    %v1056 = vadd.f32 %v1055, 1.0
    %v1057 = vrcp.pop %v1056
    %v1058 = vmul.f32 1.0, %v1057
    %v1059 = vtanh.pop %v1052
    %v1060 = vmul.f32 %v1058, %v798
    %1062 = vrot.lane.b32.xlu0 %v1059, 98
    %v1063 = vpop.permute.xlu0 %1062
    %v1065 = vmul.f32 %v1058, %v1063
    %1067 = vrot.lane.b32.xlu0 %v1065, 10
    %v1068 = vpop.permute.xlu0 %1067
    %v1070 = vadd.f32 %v1060, %v1068
    %v1071 = vtanh.pop %v1070
    %1073 = vrot.lane.b32.xlu0 %v1071, 10
    %v1074 = vpop.permute.xlu0 %1073
    %v1076 = vmul.f32 %v1058, %v1074
    %1078 = vrot.lane.b32.xlu0 %v979, 108
    %v1079 = vpop.permute.xlu0 %1078
    %v1080 = vsel %vm157, %v1079, 0
    %1082 = vmatprep.subr.mxu0 0.0
    %1083 = vmatpush1.msra.mxu0 %v147
    %1084 = vmatprep.subr.mxu0 0.0
    %1085 = vmatpush1.msra.mxu0 %v261
    %1086 = vmatprep.subr.mxu0 0.0
    %1087 = vmatpush1.msra.mxu0 0.0
    %1088 = vmatprep.subr.mxu0 0.0
    %1089 = vmatpush1.msra.mxu0 0.0
    %1090 = vmatprep.subr.mxu0 0.0
    %1091 = vmatpush1.msra.mxu0 0.0
    %1092 = vmatprep.subr.mxu0 0.0
    %1093 = vmatpush1.msra.mxu0 0.0
    %1094 = vmatprep.subr.mxu0 0.0
    %1095 = vmatpush1.msra.mxu0 0.0
    %1096 = vmatprep.subr.mxu0 0.0
    %1097 = vmatpush1.msra.mxu0 0.0
    %1098 = vmatprep.subr.mxu0 0.0
    %1099 = vmatpush1.msra.mxu0 0.0
    %1100 = vmatprep.subr.mxu0 0.0
    %1101 = vmatpush1.msra.mxu0 0.0
    %1102 = vmatprep.subr.mxu0 0.0
    %1103 = vmatpush1.msra.mxu0 0.0
    %1104 = vmatprep.subr.mxu0 0.0
    %1105 = vmatpush1.msra.mxu0 0.0
    %1106 = vmatprep.subr.mxu0 0.0
    %1107 = vmatpush1.msra.mxu0 0.0
    %1108 = vmatprep.subr.mxu0 0.0
    %1109 = vmatpush1.msra.mxu0 0.0
    %1110 = vmatprep.subr.mxu0 0.0
    %1111 = vmatpush1.msra.mxu0 0.0
    %1112 = vmatprep.subr.mxu0 0.0
    %1113 = vmatpush1.msra.mxu0 0.0
    %1114 = vmatprep.subr.mxu0 0.0
    %1115 = vmatpush1.msra.mxu0 0.0
    %1116 = vmatprep.subr.mxu0 0.0
    %1117 = vmatpush1.msra.mxu0 0.0
    %1118 = vmatprep.subr.mxu0 0.0
    %1119 = vmatpush1.msra.mxu0 0.0
    %1120 = vmatprep.subr.mxu0 0.0
    %1121 = vmatpush1.msra.mxu0 0.0
    %1122 = vmatprep.subr.mxu0 0.0
    %1123 = vmatpush1.msra.mxu0 0.0
    %1124 = vmatprep.subr.mxu0 0.0
    %1125 = vmatpush1.msra.mxu0 0.0
    %1126 = vmatprep.subr.mxu0 0.0
    %1127 = vmatpush1.msra.mxu0 0.0
    %1128 = vmatprep.subr.mxu0 0.0
    %1129 = vmatpush1.msra.mxu0 0.0
    %1130 = vmatprep.subr.mxu0 0.0
    %1131 = vmatpush1.msra.mxu0 0.0
    %1132 = vmatprep.subr.mxu0 0.0
    %1133 = vmatpush1.msra.mxu0 0.0
    %1134 = vmatprep.subr.mxu0 0.0
    %1135 = vmatpush1.msra.mxu0 0.0
    %1136 = vmatprep.subr.mxu0 0.0
    %1137 = vmatpush1.msra.mxu0 0.0
    %1138 = vmatprep.subr.mxu0 0.0
    %1139 = vmatpush1.msra.mxu0 0.0
    %1140 = vmatprep.subr.mxu0 0.0
    %1141 = vmatpush1.msra.mxu0 0.0
    %1142 = vmatprep.subr.mxu0 0.0
    %1143 = vmatpush1.msra.mxu0 0.0
    %1144 = vmatprep.subr.mxu0 0.0
    %1145 = vmatpush1.msra.mxu0 0.0
    %1146 = vmatprep.mubr.f32.mxu0 0.0
    %1147 = vmatmul.mubr.f32.gmra.mrb[0].mxu0 %v1080
    %v1148 = vpop.f32.mrb[0].mxu0
    %v1149 = vadd.f32 0.0, %v1148
    %v1150 = vpop.f32.mrb[0].mxu0
    %1151 = vdwg.mxu0
    %1153 = vrot.lane.b32.xlu0 %v1076, 108
    %v1154 = vpop.permute.xlu0 %1153
    %v1155 = vsel %vm157, %v1154, 0
    %1157 = vmatprep.subr.mxu0 0.0
    %1158 = vmatpush1.msra.mxu0 %v145
    %1159 = vmatprep.subr.mxu0 0.0
    %1160 = vmatpush1.msra.mxu0 %v339
    %1161 = vmatprep.subr.mxu0 0.0
    %1162 = vmatpush1.msra.mxu0 0.0
    %1163 = vmatprep.subr.mxu0 0.0
    %1164 = vmatpush1.msra.mxu0 0.0
    %1165 = vmatprep.subr.mxu0 0.0
    %1166 = vmatpush1.msra.mxu0 0.0
    %1167 = vmatprep.subr.mxu0 0.0
    %1168 = vmatpush1.msra.mxu0 0.0
    %1169 = vmatprep.subr.mxu0 0.0
    %1170 = vmatpush1.msra.mxu0 0.0
    %1171 = vmatprep.subr.mxu0 0.0
    %1172 = vmatpush1.msra.mxu0 0.0
    %1173 = vmatprep.subr.mxu0 0.0
    %1174 = vmatpush1.msra.mxu0 0.0
    %1175 = vmatprep.subr.mxu0 0.0
    %1176 = vmatpush1.msra.mxu0 0.0
    %1177 = vmatprep.subr.mxu0 0.0
    %1178 = vmatpush1.msra.mxu0 0.0
    %1179 = vmatprep.subr.mxu0 0.0
    %1180 = vmatpush1.msra.mxu0 0.0
    %1181 = vmatprep.subr.mxu0 0.0
    %1182 = vmatpush1.msra.mxu0 0.0
    %1183 = vmatprep.subr.mxu0 0.0
    %1184 = vmatpush1.msra.mxu0 0.0
    %1185 = vmatprep.subr.mxu0 0.0
    %1186 = vmatpush1.msra.mxu0 0.0
    %1187 = vmatprep.subr.mxu0 0.0
    %1188 = vmatpush1.msra.mxu0 0.0
    %1189 = vmatprep.subr.mxu0 0.0
    %1190 = vmatpush1.msra.mxu0 0.0
    %1191 = vmatprep.subr.mxu0 0.0
    %1192 = vmatpush1.msra.mxu0 0.0
    %1193 = vmatprep.subr.mxu0 0.0
    %1194 = vmatpush1.msra.mxu0 0.0
    %1195 = vmatprep.subr.mxu0 0.0
    %1196 = vmatpush1.msra.mxu0 0.0
    %1197 = vmatprep.subr.mxu0 0.0
    %1198 = vmatpush1.msra.mxu0 0.0
    %1199 = vmatprep.subr.mxu0 0.0
    %1200 = vmatpush1.msra.mxu0 0.0
    %1201 = vmatprep.subr.mxu0 0.0
    %1202 = vmatpush1.msra.mxu0 0.0
    %1203 = vmatprep.subr.mxu0 0.0
    %1204 = vmatpush1.msra.mxu0 0.0
    %1205 = vmatprep.subr.mxu0 0.0
    %1206 = vmatpush1.msra.mxu0 0.0
    %1207 = vmatprep.subr.mxu0 0.0
    %1208 = vmatpush1.msra.mxu0 0.0
    %1209 = vmatprep.subr.mxu0 0.0
    %1210 = vmatpush1.msra.mxu0 0.0
    %1211 = vmatprep.subr.mxu0 0.0
    %1212 = vmatpush1.msra.mxu0 0.0
    %1213 = vmatprep.subr.mxu0 0.0
    %1214 = vmatpush1.msra.mxu0 0.0
    %1215 = vmatprep.subr.mxu0 0.0
    %1216 = vmatpush1.msra.mxu0 0.0
    %1217 = vmatprep.subr.mxu0 0.0
    %1218 = vmatpush1.msra.mxu0 0.0
    %1219 = vmatprep.subr.mxu0 0.0
    %1220 = vmatpush1.msra.mxu0 0.0
    %1221 = vmatprep.mubr.f32.mxu0 0.0
    %1222 = vmatmul.mubr.f32.gmra.mrb[0].mxu0 %v1155
    %v1223 = vpop.f32.mrb[0].mxu0
    %v1224 = vadd.f32 %v1149, %v1223
    %v1225 = vpop.f32.mrb[0].mxu0
    %1226 = vdwg.mxu0
    %v1227 = vadd.f32 %v1224, %v154
    %v1228 = vxor.u32 %v1227, 2147483648
    %v1229 = vmul.f32 %v1228, 1.442695
    %v1230 = vpow.pop %v1229
    %v1231 = vadd.f32 %v1230, 1.0
    %v1232 = vrcp.pop %v1231
    %v1233 = vmul.f32 1.0, %v1232
    %v1234 = vtanh.pop %v1227
    %v1235 = vmul.f32 %v1233, %v973
    %1237 = vrot.lane.b32.xlu0 %v1234, 98
    %v1238 = vpop.permute.xlu0 %1237
    %v1240 = vmul.f32 %v1233, %v1238
    %1242 = vrot.lane.b32.xlu0 %v1240, 10
    %v1243 = vpop.permute.xlu0 %1242
    %v1245 = vadd.f32 %v1235, %v1243
    %v1246 = vtanh.pop %v1245
    %1248 = vrot.lane.b32.xlu0 %v1246, 10
    %v1249 = vpop.permute.xlu0 %1248
    %v1251 = vmul.f32 %v1233, %v1249
    %s1252 = scalar_lea.vmem [#allocation2], 8
    %v1253 = vld [vmem:[%s1252] sm:$0x3]
    %1254 = vmatprep.subr.mxu0 0.0
    %1255 = vmatpush1.msra.mxu0 %v143
    %1256 = vmatprep.subr.mxu0 0.0
    %1257 = vmatpush1.msra.mxu0 %v163
    %1258 = vmatprep.subr.mxu0 0.0
    %1259 = vmatpush1.msra.mxu0 0.0
    %1260 = vmatprep.subr.mxu0 0.0
    %1261 = vmatpush1.msra.mxu0 0.0
    %1262 = vmatprep.subr.mxu0 0.0
    %1263 = vmatpush1.msra.mxu0 0.0
    %1264 = vmatprep.subr.mxu0 0.0
    %1265 = vmatpush1.msra.mxu0 0.0
    %1266 = vmatprep.subr.mxu0 0.0
    %1267 = vmatpush1.msra.mxu0 0.0
    %1268 = vmatprep.subr.mxu0 0.0
    %1269 = vmatpush1.msra.mxu0 0.0
    %1270 = vmatprep.subr.mxu0 0.0
    %1271 = vmatpush1.msra.mxu0 0.0
    %1272 = vmatprep.subr.mxu0 0.0
    %1273 = vmatpush1.msra.mxu0 0.0
    %1274 = vmatprep.subr.mxu0 0.0
    %1275 = vmatpush1.msra.mxu0 0.0
    %1276 = vmatprep.subr.mxu0 0.0
    %1277 = vmatpush1.msra.mxu0 0.0
    %1278 = vmatprep.subr.mxu0 0.0
    %1279 = vmatpush1.msra.mxu0 0.0
    %1280 = vmatprep.subr.mxu0 0.0
    %1281 = vmatpush1.msra.mxu0 0.0
    %1282 = vmatprep.subr.mxu0 0.0
    %1283 = vmatpush1.msra.mxu0 0.0
    %1284 = vmatprep.subr.mxu0 0.0
    %1285 = vmatpush1.msra.mxu0 0.0
    %1286 = vmatprep.subr.mxu0 0.0
    %1287 = vmatpush1.msra.mxu0 0.0
    %1288 = vmatprep.subr.mxu0 0.0
    %1289 = vmatpush1.msra.mxu0 0.0
    %1290 = vmatprep.subr.mxu0 0.0
    %1291 = vmatpush1.msra.mxu0 0.0
    %1292 = vmatprep.subr.mxu0 0.0
    %1293 = vmatpush1.msra.mxu0 0.0
    %1294 = vmatprep.subr.mxu0 0.0
    %1295 = vmatpush1.msra.mxu0 0.0
    %1296 = vmatprep.subr.mxu0 0.0
    %1297 = vmatpush1.msra.mxu0 0.0
    %1298 = vmatprep.subr.mxu0 0.0
    %1299 = vmatpush1.msra.mxu0 0.0
    %1300 = vmatprep.subr.mxu0 0.0
    %1301 = vmatpush1.msra.mxu0 0.0
    %1302 = vmatprep.subr.mxu0 0.0
    %1303 = vmatpush1.msra.mxu0 0.0
    %1304 = vmatprep.subr.mxu0 0.0
    %1305 = vmatpush1.msra.mxu0 0.0
    %1306 = vmatprep.subr.mxu0 0.0
    %1307 = vmatpush1.msra.mxu0 0.0
    %1308 = vmatprep.subr.mxu0 0.0
    %1309 = vmatpush1.msra.mxu0 0.0
    %1310 = vmatprep.subr.mxu0 0.0
    %1311 = vmatpush1.msra.mxu0 0.0
    %1312 = vmatprep.subr.mxu0 0.0
    %1313 = vmatpush1.msra.mxu0 0.0
    %1314 = vmatprep.subr.mxu0 0.0
    %1315 = vmatpush1.msra.mxu0 0.0
    %1316 = vmatprep.subr.mxu0 0.0
    %1317 = vmatpush1.msra.mxu0 0.0
    %1318 = vmatprep.mubr.f32.mxu0 0.0
    %1319 = vmatmul.mubr.f32.gmra.mrb[0].mxu0 %v1155
    %v1320 = vpop.f32.mrb[0].mxu0
    %v1321 = vadd.f32 0.0, %v1320
    %v1322 = vpop.f32.mrb[0].mxu0
    %1323 = vdwg.mxu0
    %v1324 = vadd.f32 %v1253, %v1321
    %v1325 = vxor.u32 %v1324, 2147483648
    %v1326 = vmul.f32 %v1325, 1.442695
    %v1327 = vpow.pop %v1326
    %v1328 = vadd.f32 %v1327, 1.0
    %v1329 = vrcp.pop %v1328
    %v1330 = vmul.f32 1.0, %v1329
    %v1331 = vtanh.pop %v1324
    %v1332 = vmul.f32 %v1330, %v1070
    %1334 = vrot.lane.b32.xlu0 %v1331, 98
    %v1335 = vpop.permute.xlu0 %1334
    %v1337 = vmul.f32 %v1330, %v1335
    %1339 = vrot.lane.b32.xlu0 %v1337, 10
    %v1340 = vpop.permute.xlu0 %1339
    %v1342 = vadd.f32 %v1332, %v1340
    %v1343 = vtanh.pop %v1342
    %1345 = vrot.lane.b32.xlu0 %v1343, 10
    %v1346 = vpop.permute.xlu0 %1345
    %v1348 = vmul.f32 %v1330, %v1346
    %1350 = vrot.lane.b32.xlu0 %v1251, 108
    %v1351 = vpop.permute.xlu0 %1350
    %v1352 = vsel %vm157, %v1351, 0
    %1354 = vmatprep.subr.mxu0 0.0
    %1355 = vmatpush1.msra.mxu0 %v147
    %1356 = vmatprep.subr.mxu0 0.0
    %1357 = vmatpush1.msra.mxu0 %v261
    %1358 = vmatprep.subr.mxu0 0.0
    %1359 = vmatpush1.msra.mxu0 0.0
    %1360 = vmatprep.subr.mxu0 0.0
    %1361 = vmatpush1.msra.mxu0 0.0
    %1362 = vmatprep.subr.mxu0 0.0
    %1363 = vmatpush1.msra.mxu0 0.0
    %1364 = vmatprep.subr.mxu0 0.0
    %1365 = vmatpush1.msra.mxu0 0.0
    %1366 = vmatprep.subr.mxu0 0.0
    %1367 = vmatpush1.msra.mxu0 0.0
    %1368 = vmatprep.subr.mxu0 0.0
    %1369 = vmatpush1.msra.mxu0 0.0
    %1370 = vmatprep.subr.mxu0 0.0
    %1371 = vmatpush1.msra.mxu0 0.0
    %1372 = vmatprep.subr.mxu0 0.0
    %1373 = vmatpush1.msra.mxu0 0.0
    %1374 = vmatprep.subr.mxu0 0.0
    %1375 = vmatpush1.msra.mxu0 0.0
    %1376 = vmatprep.subr.mxu0 0.0
    %1377 = vmatpush1.msra.mxu0 0.0
    %1378 = vmatprep.subr.mxu0 0.0
    %1379 = vmatpush1.msra.mxu0 0.0
    %1380 = vmatprep.subr.mxu0 0.0
    %1381 = vmatpush1.msra.mxu0 0.0
    %1382 = vmatprep.subr.mxu0 0.0
    %1383 = vmatpush1.msra.mxu0 0.0
    %1384 = vmatprep.subr.mxu0 0.0
    %1385 = vmatpush1.msra.mxu0 0.0
    %1386 = vmatprep.subr.mxu0 0.0
    %1387 = vmatpush1.msra.mxu0 0.0
    %1388 = vmatprep.subr.mxu0 0.0
    %1389 = vmatpush1.msra.mxu0 0.0
    %1390 = vmatprep.subr.mxu0 0.0
    %1391 = vmatpush1.msra.mxu0 0.0
    %1392 = vmatprep.subr.mxu0 0.0
    %1393 = vmatpush1.msra.mxu0 0.0
    %1394 = vmatprep.subr.mxu0 0.0
    %1395 = vmatpush1.msra.mxu0 0.0
    %1396 = vmatprep.subr.mxu0 0.0
    %1397 = vmatpush1.msra.mxu0 0.0
    %1398 = vmatprep.subr.mxu0 0.0
    %1399 = vmatpush1.msra.mxu0 0.0
    %1400 = vmatprep.subr.mxu0 0.0
    %1401 = vmatpush1.msra.mxu0 0.0
    %1402 = vmatprep.subr.mxu0 0.0
    %1403 = vmatpush1.msra.mxu0 0.0
    %1404 = vmatprep.subr.mxu0 0.0
    %1405 = vmatpush1.msra.mxu0 0.0
    %1406 = vmatprep.subr.mxu0 0.0
    %1407 = vmatpush1.msra.mxu0 0.0
    %1408 = vmatprep.subr.mxu0 0.0
    %1409 = vmatpush1.msra.mxu0 0.0
    %1410 = vmatprep.subr.mxu0 0.0
    %1411 = vmatpush1.msra.mxu0 0.0
    %1412 = vmatprep.subr.mxu0 0.0
    %1413 = vmatpush1.msra.mxu0 0.0
    %1414 = vmatprep.subr.mxu0 0.0
    %1415 = vmatpush1.msra.mxu0 0.0
    %1416 = vmatprep.subr.mxu0 0.0
    %1417 = vmatpush1.msra.mxu0 0.0
    %1418 = vmatprep.mubr.f32.mxu0 0.0
    %1419 = vmatmul.mubr.f32.gmra.mrb[0].mxu0 %v1352
    %v1420 = vpop.f32.mrb[0].mxu0
    %v1421 = vadd.f32 0.0, %v1420
    %v1422 = vpop.f32.mrb[0].mxu0
    %1423 = vdwg.mxu0
    %1425 = vrot.lane.b32.xlu0 %v1348, 108
    %v1426 = vpop.permute.xlu0 %1425
    %v1427 = vsel %vm157, %v1426, 0
    %1429 = vmatprep.subr.mxu0 0.0
    %1430 = vmatpush1.msra.mxu0 %v145
    %1431 = vmatprep.subr.mxu0 0.0
    %1432 = vmatpush1.msra.mxu0 %v339
    %1433 = vmatprep.subr.mxu0 0.0
    %1434 = vmatpush1.msra.mxu0 0.0
    %1435 = vmatprep.subr.mxu0 0.0
    %1436 = vmatpush1.msra.mxu0 0.0
    %1437 = vmatprep.subr.mxu0 0.0
    %1438 = vmatpush1.msra.mxu0 0.0
    %1439 = vmatprep.subr.mxu0 0.0
    %1440 = vmatpush1.msra.mxu0 0.0
    %1441 = vmatprep.subr.mxu0 0.0
    %1442 = vmatpush1.msra.mxu0 0.0
    %1443 = vmatprep.subr.mxu0 0.0
    %1444 = vmatpush1.msra.mxu0 0.0
    %1445 = vmatprep.subr.mxu0 0.0
    %1446 = vmatpush1.msra.mxu0 0.0
    %1447 = vmatprep.subr.mxu0 0.0
    %1448 = vmatpush1.msra.mxu0 0.0
    %1449 = vmatprep.subr.mxu0 0.0
    %1450 = vmatpush1.msra.mxu0 0.0
    %1451 = vmatprep.subr.mxu0 0.0
    %1452 = vmatpush1.msra.mxu0 0.0
    %1453 = vmatprep.subr.mxu0 0.0
    %1454 = vmatpush1.msra.mxu0 0.0
    %1455 = vmatprep.subr.mxu0 0.0
    %1456 = vmatpush1.msra.mxu0 0.0
    %1457 = vmatprep.subr.mxu0 0.0
    %1458 = vmatpush1.msra.mxu0 0.0
    %1459 = vmatprep.subr.mxu0 0.0
    %1460 = vmatpush1.msra.mxu0 0.0
    %1461 = vmatprep.subr.mxu0 0.0
    %1462 = vmatpush1.msra.mxu0 0.0
    %1463 = vmatprep.subr.mxu0 0.0
    %1464 = vmatpush1.msra.mxu0 0.0
    %1465 = vmatprep.subr.mxu0 0.0
    %1466 = vmatpush1.msra.mxu0 0.0
    %1467 = vmatprep.subr.mxu0 0.0
    %1468 = vmatpush1.msra.mxu0 0.0
    %1469 = vmatprep.subr.mxu0 0.0
    %1470 = vmatpush1.msra.mxu0 0.0
    %1471 = vmatprep.subr.mxu0 0.0
    %1472 = vmatpush1.msra.mxu0 0.0
    %1473 = vmatprep.subr.mxu0 0.0
    %1474 = vmatpush1.msra.mxu0 0.0
    %1475 = vmatprep.subr.mxu0 0.0
    %1476 = vmatpush1.msra.mxu0 0.0
    %1477 = vmatprep.subr.mxu0 0.0
    %1478 = vmatpush1.msra.mxu0 0.0
    %1479 = vmatprep.subr.mxu0 0.0
    %1480 = vmatpush1.msra.mxu0 0.0
    %1481 = vmatprep.subr.mxu0 0.0
    %1482 = vmatpush1.msra.mxu0 0.0
    %1483 = vmatprep.subr.mxu0 0.0
    %1484 = vmatpush1.msra.mxu0 0.0
    %1485 = vmatprep.subr.mxu0 0.0
    %1486 = vmatpush1.msra.mxu0 0.0
    %1487 = vmatprep.subr.mxu0 0.0
    %1488 = vmatpush1.msra.mxu0 0.0
    %1489 = vmatprep.subr.mxu0 0.0
    %1490 = vmatpush1.msra.mxu0 0.0
    %1491 = vmatprep.subr.mxu0 0.0
    %1492 = vmatpush1.msra.mxu0 0.0
    %1493 = vmatprep.mubr.f32.mxu0 0.0
    %1494 = vmatmul.mubr.f32.gmra.mrb[0].mxu0 %v1427
    %v1495 = vpop.f32.mrb[0].mxu0
    %v1496 = vadd.f32 %v1421, %v1495
    %v1497 = vpop.f32.mrb[0].mxu0
    %1498 = vdwg.mxu0
    %v1499 = vadd.f32 %v1496, %v154
    %v1500 = vxor.u32 %v1499, 2147483648
    %v1501 = vmul.f32 %v1500, 1.442695
    %v1502 = vpow.pop %v1501
    %v1503 = vadd.f32 %v1502, 1.0
    %v1504 = vrcp.pop %v1503
    %v1505 = vmul.f32 1.0, %v1504
    %v1506 = vtanh.pop %v1499
    %v1507 = vmul.f32 %v1505, %v1245
    %1509 = vrot.lane.b32.xlu0 %v1506, 98
    %v1510 = vpop.permute.xlu0 %1509
    %v1512 = vmul.f32 %v1505, %v1510
    %1514 = vrot.lane.b32.xlu0 %v1512, 10
    %v1515 = vpop.permute.xlu0 %1514
    %v1517 = vadd.f32 %v1507, %v1515
    %v1518 = vtanh.pop %v1517
    %1520 = vrot.lane.b32.xlu0 %v1518, 10
    %v1521 = vpop.permute.xlu0 %1520
    %v1523 = vmul.f32 %v1505, %v1521
    %s1524 = scalar_lea.vmem [#allocation2], 10
    %v1525 = vld [vmem:[%s1524] sm:$0x3]
    %1526 = vmatprep.subr.mxu0 0.0
    %1527 = vmatpush1.msra.mxu0 %v143
    %1528 = vmatprep.subr.mxu0 0.0
    %1529 = vmatpush1.msra.mxu0 %v163
    %1530 = vmatprep.subr.mxu0 0.0
    %1531 = vmatpush1.msra.mxu0 0.0
    %1532 = vmatprep.subr.mxu0 0.0
    %1533 = vmatpush1.msra.mxu0 0.0
    %1534 = vmatprep.subr.mxu0 0.0
    %1535 = vmatpush1.msra.mxu0 0.0
    %1536 = vmatprep.subr.mxu0 0.0
    %1537 = vmatpush1.msra.mxu0 0.0
    %1538 = vmatprep.subr.mxu0 0.0
    %1539 = vmatpush1.msra.mxu0 0.0
    %1540 = vmatprep.subr.mxu0 0.0
    %1541 = vmatpush1.msra.mxu0 0.0
    %1542 = vmatprep.subr.mxu0 0.0
    %1543 = vmatpush1.msra.mxu0 0.0
    %1544 = vmatprep.subr.mxu0 0.0
    %1545 = vmatpush1.msra.mxu0 0.0
    %1546 = vmatprep.subr.mxu0 0.0
    %1547 = vmatpush1.msra.mxu0 0.0
    %1548 = vmatprep.subr.mxu0 0.0
    %1549 = vmatpush1.msra.mxu0 0.0
    %1550 = vmatprep.subr.mxu0 0.0
    %1551 = vmatpush1.msra.mxu0 0.0
    %1552 = vmatprep.subr.mxu0 0.0
    %1553 = vmatpush1.msra.mxu0 0.0
    %1554 = vmatprep.subr.mxu0 0.0
    %1555 = vmatpush1.msra.mxu0 0.0
    %1556 = vmatprep.subr.mxu0 0.0
    %1557 = vmatpush1.msra.mxu0 0.0
    %1558 = vmatprep.subr.mxu0 0.0
    %1559 = vmatpush1.msra.mxu0 0.0
    %1560 = vmatprep.subr.mxu0 0.0
    %1561 = vmatpush1.msra.mxu0 0.0
    %1562 = vmatprep.subr.mxu0 0.0
    %1563 = vmatpush1.msra.mxu0 0.0
    %1564 = vmatprep.subr.mxu0 0.0
    %1565 = vmatpush1.msra.mxu0 0.0
    %1566 = vmatprep.subr.mxu0 0.0
    %1567 = vmatpush1.msra.mxu0 0.0
    %1568 = vmatprep.subr.mxu0 0.0
    %1569 = vmatpush1.msra.mxu0 0.0
    %1570 = vmatprep.subr.mxu0 0.0
    %1571 = vmatpush1.msra.mxu0 0.0
    %1572 = vmatprep.subr.mxu0 0.0
    %1573 = vmatpush1.msra.mxu0 0.0
    %1574 = vmatprep.subr.mxu0 0.0
    %1575 = vmatpush1.msra.mxu0 0.0
    %1576 = vmatprep.subr.mxu0 0.0
    %1577 = vmatpush1.msra.mxu0 0.0
    %1578 = vmatprep.subr.mxu0 0.0
    %1579 = vmatpush1.msra.mxu0 0.0
    %1580 = vmatprep.subr.mxu0 0.0
    %1581 = vmatpush1.msra.mxu0 0.0
    %1582 = vmatprep.subr.mxu0 0.0
    %1583 = vmatpush1.msra.mxu0 0.0
    %1584 = vmatprep.subr.mxu0 0.0
    %1585 = vmatpush1.msra.mxu0 0.0
    %1586 = vmatprep.subr.mxu0 0.0
    %1587 = vmatpush1.msra.mxu0 0.0
    %1588 = vmatprep.subr.mxu0 0.0
    %1589 = vmatpush1.msra.mxu0 0.0
    %1590 = vmatprep.mubr.f32.mxu0 0.0
    %1591 = vmatmul.mubr.f32.gmra.mrb[0].mxu0 %v1427
    %v1592 = vpop.f32.mrb[0].mxu0
    %v1593 = vadd.f32 0.0, %v1592
    %v1594 = vpop.f32.mrb[0].mxu0
    %1595 = vdwg.mxu0
    %v1596 = vadd.f32 %v1525, %v1593
    %v1597 = vxor.u32 %v1596, 2147483648
    %v1598 = vmul.f32 %v1597, 1.442695
    %v1599 = vpow.pop %v1598
    %v1600 = vadd.f32 %v1599, 1.0
    %v1601 = vrcp.pop %v1600
    %v1602 = vmul.f32 1.0, %v1601
    %v1603 = vtanh.pop %v1596
    %v1604 = vmul.f32 %v1602, %v1342
    %1606 = vrot.lane.b32.xlu0 %v1603, 98
    %v1607 = vpop.permute.xlu0 %1606
    %v1609 = vmul.f32 %v1602, %v1607
    %1611 = vrot.lane.b32.xlu0 %v1609, 10
    %v1612 = vpop.permute.xlu0 %1611
    %v1614 = vadd.f32 %v1604, %v1612
    %v1615 = vtanh.pop %v1614
    %1617 = vrot.lane.b32.xlu0 %v1615, 10
    %v1618 = vpop.permute.xlu0 %1617
    %v1620 = vmul.f32 %v1602, %v1618
    %1622 = vrot.lane.b32.xlu0 %v1523, 108
    %v1623 = vpop.permute.xlu0 %1622
    %v1624 = vsel %vm157, %v1623, 0
    %1626 = vmatprep.subr.mxu0 0.0
    %1627 = vmatpush1.msra.mxu0 %v147
    %1628 = vmatprep.subr.mxu0 0.0
    %1629 = vmatpush1.msra.mxu0 %v261
    %1630 = vmatprep.subr.mxu0 0.0
    %1631 = vmatpush1.msra.mxu0 0.0
    %1632 = vmatprep.subr.mxu0 0.0
    %1633 = vmatpush1.msra.mxu0 0.0
    %1634 = vmatprep.subr.mxu0 0.0
    %1635 = vmatpush1.msra.mxu0 0.0
    %1636 = vmatprep.subr.mxu0 0.0
    %1637 = vmatpush1.msra.mxu0 0.0
    %1638 = vmatprep.subr.mxu0 0.0
    %1639 = vmatpush1.msra.mxu0 0.0
    %1640 = vmatprep.subr.mxu0 0.0
    %1641 = vmatpush1.msra.mxu0 0.0
    %1642 = vmatprep.subr.mxu0 0.0
    %1643 = vmatpush1.msra.mxu0 0.0
    %1644 = vmatprep.subr.mxu0 0.0
    %1645 = vmatpush1.msra.mxu0 0.0
    %1646 = vmatprep.subr.mxu0 0.0
    %1647 = vmatpush1.msra.mxu0 0.0
    %1648 = vmatprep.subr.mxu0 0.0
    %1649 = vmatpush1.msra.mxu0 0.0
    %1650 = vmatprep.subr.mxu0 0.0
    %1651 = vmatpush1.msra.mxu0 0.0
    %1652 = vmatprep.subr.mxu0 0.0
    %1653 = vmatpush1.msra.mxu0 0.0
    %1654 = vmatprep.subr.mxu0 0.0
    %1655 = vmatpush1.msra.mxu0 0.0
    %1656 = vmatprep.subr.mxu0 0.0
    %1657 = vmatpush1.msra.mxu0 0.0
    %1658 = vmatprep.subr.mxu0 0.0
    %1659 = vmatpush1.msra.mxu0 0.0
    %1660 = vmatprep.subr.mxu0 0.0
    %1661 = vmatpush1.msra.mxu0 0.0
    %1662 = vmatprep.subr.mxu0 0.0
    %1663 = vmatpush1.msra.mxu0 0.0
    %1664 = vmatprep.subr.mxu0 0.0
    %1665 = vmatpush1.msra.mxu0 0.0
    %1666 = vmatprep.subr.mxu0 0.0
    %1667 = vmatpush1.msra.mxu0 0.0
    %1668 = vmatprep.subr.mxu0 0.0
    %1669 = vmatpush1.msra.mxu0 0.0
    %1670 = vmatprep.subr.mxu0 0.0
    %1671 = vmatpush1.msra.mxu0 0.0
    %1672 = vmatprep.subr.mxu0 0.0
    %1673 = vmatpush1.msra.mxu0 0.0
    %1674 = vmatprep.subr.mxu0 0.0
    %1675 = vmatpush1.msra.mxu0 0.0
    %1676 = vmatprep.subr.mxu0 0.0
    %1677 = vmatpush1.msra.mxu0 0.0
    %1678 = vmatprep.subr.mxu0 0.0
    %1679 = vmatpush1.msra.mxu0 0.0
    %1680 = vmatprep.subr.mxu0 0.0
    %1681 = vmatpush1.msra.mxu0 0.0
    %1682 = vmatprep.subr.mxu0 0.0
    %1683 = vmatpush1.msra.mxu0 0.0
    %1684 = vmatprep.subr.mxu0 0.0
    %1685 = vmatpush1.msra.mxu0 0.0
    %1686 = vmatprep.subr.mxu0 0.0
    %1687 = vmatpush1.msra.mxu0 0.0
    %1688 = vmatprep.subr.mxu0 0.0
    %1689 = vmatpush1.msra.mxu0 0.0
    %1690 = vmatprep.mubr.f32.mxu0 0.0
    %1691 = vmatmul.mubr.f32.gmra.mrb[0].mxu0 %v1624
    %v1692 = vpop.f32.mrb[0].mxu0
    %v1693 = vadd.f32 0.0, %v1692
    %v1694 = vpop.f32.mrb[0].mxu0
    %1695 = vdwg.mxu0
    %1697 = vrot.lane.b32.xlu0 %v1620, 108
    %v1698 = vpop.permute.xlu0 %1697
    %v1699 = vsel %vm157, %v1698, 0
    %1701 = vmatprep.subr.mxu0 0.0
    %1702 = vmatpush1.msra.mxu0 %v145
    %1703 = vmatprep.subr.mxu0 0.0
    %1704 = vmatpush1.msra.mxu0 %v339
    %1705 = vmatprep.subr.mxu0 0.0
    %1706 = vmatpush1.msra.mxu0 0.0
    %1707 = vmatprep.subr.mxu0 0.0
    %1708 = vmatpush1.msra.mxu0 0.0
    %1709 = vmatprep.subr.mxu0 0.0
    %1710 = vmatpush1.msra.mxu0 0.0
    %1711 = vmatprep.subr.mxu0 0.0
    %1712 = vmatpush1.msra.mxu0 0.0
    %1713 = vmatprep.subr.mxu0 0.0
    %1714 = vmatpush1.msra.mxu0 0.0
    %1715 = vmatprep.subr.mxu0 0.0
    %1716 = vmatpush1.msra.mxu0 0.0
    %1717 = vmatprep.subr.mxu0 0.0
    %1718 = vmatpush1.msra.mxu0 0.0
    %1719 = vmatprep.subr.mxu0 0.0
    %1720 = vmatpush1.msra.mxu0 0.0
    %1721 = vmatprep.subr.mxu0 0.0
    %1722 = vmatpush1.msra.mxu0 0.0
    %1723 = vmatprep.subr.mxu0 0.0
    %1724 = vmatpush1.msra.mxu0 0.0
    %1725 = vmatprep.subr.mxu0 0.0
    %1726 = vmatpush1.msra.mxu0 0.0
    %1727 = vmatprep.subr.mxu0 0.0
    %1728 = vmatpush1.msra.mxu0 0.0
    %1729 = vmatprep.subr.mxu0 0.0
    %1730 = vmatpush1.msra.mxu0 0.0
    %1731 = vmatprep.subr.mxu0 0.0
    %1732 = vmatpush1.msra.mxu0 0.0
    %1733 = vmatprep.subr.mxu0 0.0
    %1734 = vmatpush1.msra.mxu0 0.0
    %1735 = vmatprep.subr.mxu0 0.0
    %1736 = vmatpush1.msra.mxu0 0.0
    %1737 = vmatprep.subr.mxu0 0.0
    %1738 = vmatpush1.msra.mxu0 0.0
    %1739 = vmatprep.subr.mxu0 0.0
    %1740 = vmatpush1.msra.mxu0 0.0
    %1741 = vmatprep.subr.mxu0 0.0
    %1742 = vmatpush1.msra.mxu0 0.0
    %1743 = vmatprep.subr.mxu0 0.0
    %1744 = vmatpush1.msra.mxu0 0.0
    %1745 = vmatprep.subr.mxu0 0.0
    %1746 = vmatpush1.msra.mxu0 0.0
    %1747 = vmatprep.subr.mxu0 0.0
    %1748 = vmatpush1.msra.mxu0 0.0
    %1749 = vmatprep.subr.mxu0 0.0
    %1750 = vmatpush1.msra.mxu0 0.0
    %1751 = vmatprep.subr.mxu0 0.0
    %1752 = vmatpush1.msra.mxu0 0.0
    %1753 = vmatprep.subr.mxu0 0.0
    %1754 = vmatpush1.msra.mxu0 0.0
    %1755 = vmatprep.subr.mxu0 0.0
    %1756 = vmatpush1.msra.mxu0 0.0
    %1757 = vmatprep.subr.mxu0 0.0
    %1758 = vmatpush1.msra.mxu0 0.0
    %1759 = vmatprep.subr.mxu0 0.0
    %1760 = vmatpush1.msra.mxu0 0.0
    %1761 = vmatprep.subr.mxu0 0.0
    %1762 = vmatpush1.msra.mxu0 0.0
    %1763 = vmatprep.subr.mxu0 0.0
    %1764 = vmatpush1.msra.mxu0 0.0
    %1765 = vmatprep.mubr.f32.mxu0 0.0
    %1766 = vmatmul.mubr.f32.gmra.mrb[0].mxu0 %v1699
    %v1767 = vpop.f32.mrb[0].mxu0
    %v1768 = vadd.f32 %v1693, %v1767
    %v1769 = vpop.f32.mrb[0].mxu0
    %1770 = vdwg.mxu0
    %v1771 = vadd.f32 %v1768, %v154
    %v1772 = vxor.u32 %v1771, 2147483648
    %v1773 = vmul.f32 %v1772, 1.442695
    %v1774 = vpow.pop %v1773
    %v1775 = vadd.f32 %v1774, 1.0
    %v1776 = vrcp.pop %v1775
    %v1777 = vmul.f32 1.0, %v1776
    %v1778 = vtanh.pop %v1771
    %v1779 = vmul.f32 %v1777, %v1517
    %1781 = vrot.lane.b32.xlu0 %v1778, 98
    %v1782 = vpop.permute.xlu0 %1781
    %v1784 = vmul.f32 %v1777, %v1782
    %1786 = vrot.lane.b32.xlu0 %v1784, 10
    %v1787 = vpop.permute.xlu0 %1786
    %v1789 = vadd.f32 %v1779, %v1787
    %v1790 = vtanh.pop %v1789
    %1792 = vrot.lane.b32.xlu0 %v1790, 10
    %v1793 = vpop.permute.xlu0 %1792
    %v1795 = vmul.f32 %v1777, %v1793
    %s1796 = scalar_lea.vmem [#allocation2], 12
    %v1797 = vld [vmem:[%s1796] sm:$0x3]
    %1798 = vmatprep.subr.mxu0 0.0
    %1799 = vmatpush1.msra.mxu0 %v143
    %1800 = vmatprep.subr.mxu0 0.0
    %1801 = vmatpush1.msra.mxu0 %v163
    %1802 = vmatprep.subr.mxu0 0.0
    %1803 = vmatpush1.msra.mxu0 0.0
    %1804 = vmatprep.subr.mxu0 0.0
    %1805 = vmatpush1.msra.mxu0 0.0
    %1806 = vmatprep.subr.mxu0 0.0
    %1807 = vmatpush1.msra.mxu0 0.0
    %1808 = vmatprep.subr.mxu0 0.0
    %1809 = vmatpush1.msra.mxu0 0.0
    %1810 = vmatprep.subr.mxu0 0.0
    %1811 = vmatpush1.msra.mxu0 0.0
    %1812 = vmatprep.subr.mxu0 0.0
    %1813 = vmatpush1.msra.mxu0 0.0
    %1814 = vmatprep.subr.mxu0 0.0
    %1815 = vmatpush1.msra.mxu0 0.0
    %1816 = vmatprep.subr.mxu0 0.0
    %1817 = vmatpush1.msra.mxu0 0.0
    %1818 = vmatprep.subr.mxu0 0.0
    %1819 = vmatpush1.msra.mxu0 0.0
    %1820 = vmatprep.subr.mxu0 0.0
    %1821 = vmatpush1.msra.mxu0 0.0
    %1822 = vmatprep.subr.mxu0 0.0
    %1823 = vmatpush1.msra.mxu0 0.0
    %1824 = vmatprep.subr.mxu0 0.0
    %1825 = vmatpush1.msra.mxu0 0.0
    %1826 = vmatprep.subr.mxu0 0.0
    %1827 = vmatpush1.msra.mxu0 0.0
    %1828 = vmatprep.subr.mxu0 0.0
    %1829 = vmatpush1.msra.mxu0 0.0
    %1830 = vmatprep.subr.mxu0 0.0
    %1831 = vmatpush1.msra.mxu0 0.0
    %1832 = vmatprep.subr.mxu0 0.0
    %1833 = vmatpush1.msra.mxu0 0.0
    %1834 = vmatprep.subr.mxu0 0.0
    %1835 = vmatpush1.msra.mxu0 0.0
    %1836 = vmatprep.subr.mxu0 0.0
    %1837 = vmatpush1.msra.mxu0 0.0
    %1838 = vmatprep.subr.mxu0 0.0
    %1839 = vmatpush1.msra.mxu0 0.0
    %1840 = vmatprep.subr.mxu0 0.0
    %1841 = vmatpush1.msra.mxu0 0.0
    %1842 = vmatprep.subr.mxu0 0.0
    %1843 = vmatpush1.msra.mxu0 0.0
    %1844 = vmatprep.subr.mxu0 0.0
    %1845 = vmatpush1.msra.mxu0 0.0
    %1846 = vmatprep.subr.mxu0 0.0
    %1847 = vmatpush1.msra.mxu0 0.0
    %1848 = vmatprep.subr.mxu0 0.0
    %1849 = vmatpush1.msra.mxu0 0.0
    %1850 = vmatprep.subr.mxu0 0.0
    %1851 = vmatpush1.msra.mxu0 0.0
    %1852 = vmatprep.subr.mxu0 0.0
    %1853 = vmatpush1.msra.mxu0 0.0
    %1854 = vmatprep.subr.mxu0 0.0
    %1855 = vmatpush1.msra.mxu0 0.0
    %1856 = vmatprep.subr.mxu0 0.0
    %1857 = vmatpush1.msra.mxu0 0.0
    %1858 = vmatprep.subr.mxu0 0.0
    %1859 = vmatpush1.msra.mxu0 0.0
    %1860 = vmatprep.subr.mxu0 0.0
    %1861 = vmatpush1.msra.mxu0 0.0
    %1862 = vmatprep.mubr.f32.mxu0 0.0
    %1863 = vmatmul.mubr.f32.gmra.mrb[0].mxu0 %v1699
    %v1864 = vpop.f32.mrb[0].mxu0
    %v1865 = vadd.f32 0.0, %v1864
    %v1866 = vpop.f32.mrb[0].mxu0
    %1867 = vdwg.mxu0
    %v1868 = vadd.f32 %v1797, %v1865
    %v1869 = vxor.u32 %v1868, 2147483648
    %v1870 = vmul.f32 %v1869, 1.442695
    %v1871 = vpow.pop %v1870
    %v1872 = vadd.f32 %v1871, 1.0
    %v1873 = vrcp.pop %v1872
    %v1874 = vmul.f32 1.0, %v1873
    %v1875 = vtanh.pop %v1868
    %v1876 = vmul.f32 %v1874, %v1614
    %1878 = vrot.lane.b32.xlu0 %v1875, 98
    %v1879 = vpop.permute.xlu0 %1878
    %v1881 = vmul.f32 %v1874, %v1879
    %1883 = vrot.lane.b32.xlu0 %v1881, 10
    %v1884 = vpop.permute.xlu0 %1883
    %v1886 = vadd.f32 %v1876, %v1884
    %v1887 = vtanh.pop %v1886
    %1889 = vrot.lane.b32.xlu0 %v1887, 10
    %v1890 = vpop.permute.xlu0 %1889
    %v1892 = vmul.f32 %v1874, %v1890
    %1894 = vrot.lane.b32.xlu0 %v1795, 108
    %v1895 = vpop.permute.xlu0 %1894
    %v1896 = vsel %vm157, %v1895, 0
    %1898 = vmatprep.subr.mxu0 0.0
    %1899 = vmatpush1.msra.mxu0 %v147
    %1900 = vmatprep.subr.mxu0 0.0
    %1901 = vmatpush1.msra.mxu0 %v261
    %1902 = vmatprep.subr.mxu0 0.0
    %1903 = vmatpush1.msra.mxu0 0.0
    %1904 = vmatprep.subr.mxu0 0.0
    %1905 = vmatpush1.msra.mxu0 0.0
    %1906 = vmatprep.subr.mxu0 0.0
    %1907 = vmatpush1.msra.mxu0 0.0
    %1908 = vmatprep.subr.mxu0 0.0
    %1909 = vmatpush1.msra.mxu0 0.0
    %1910 = vmatprep.subr.mxu0 0.0
    %1911 = vmatpush1.msra.mxu0 0.0
    %1912 = vmatprep.subr.mxu0 0.0
    %1913 = vmatpush1.msra.mxu0 0.0
    %1914 = vmatprep.subr.mxu0 0.0
    %1915 = vmatpush1.msra.mxu0 0.0
    %1916 = vmatprep.subr.mxu0 0.0
    %1917 = vmatpush1.msra.mxu0 0.0
    %1918 = vmatprep.subr.mxu0 0.0
    %1919 = vmatpush1.msra.mxu0 0.0
    %1920 = vmatprep.subr.mxu0 0.0
    %1921 = vmatpush1.msra.mxu0 0.0
    %1922 = vmatprep.subr.mxu0 0.0
    %1923 = vmatpush1.msra.mxu0 0.0
    %1924 = vmatprep.subr.mxu0 0.0
    %1925 = vmatpush1.msra.mxu0 0.0
    %1926 = vmatprep.subr.mxu0 0.0
    %1927 = vmatpush1.msra.mxu0 0.0
    %1928 = vmatprep.subr.mxu0 0.0
    %1929 = vmatpush1.msra.mxu0 0.0
    %1930 = vmatprep.subr.mxu0 0.0
    %1931 = vmatpush1.msra.mxu0 0.0
    %1932 = vmatprep.subr.mxu0 0.0
    %1933 = vmatpush1.msra.mxu0 0.0
    %1934 = vmatprep.subr.mxu0 0.0
    %1935 = vmatpush1.msra.mxu0 0.0
    %1936 = vmatprep.subr.mxu0 0.0
    %1937 = vmatpush1.msra.mxu0 0.0
    %1938 = vmatprep.subr.mxu0 0.0
    %1939 = vmatpush1.msra.mxu0 0.0
    %1940 = vmatprep.subr.mxu0 0.0
    %1941 = vmatpush1.msra.mxu0 0.0
    %1942 = vmatprep.subr.mxu0 0.0
    %1943 = vmatpush1.msra.mxu0 0.0
    %1944 = vmatprep.subr.mxu0 0.0
    %1945 = vmatpush1.msra.mxu0 0.0
    %1946 = vmatprep.subr.mxu0 0.0
    %1947 = vmatpush1.msra.mxu0 0.0
    %1948 = vmatprep.subr.mxu0 0.0
    %1949 = vmatpush1.msra.mxu0 0.0
    %1950 = vmatprep.subr.mxu0 0.0
    %1951 = vmatpush1.msra.mxu0 0.0
    %1952 = vmatprep.subr.mxu0 0.0
    %1953 = vmatpush1.msra.mxu0 0.0
    %1954 = vmatprep.subr.mxu0 0.0
    %1955 = vmatpush1.msra.mxu0 0.0
    %1956 = vmatprep.subr.mxu0 0.0
    %1957 = vmatpush1.msra.mxu0 0.0
    %1958 = vmatprep.subr.mxu0 0.0
    %1959 = vmatpush1.msra.mxu0 0.0
    %1960 = vmatprep.subr.mxu0 0.0
    %1961 = vmatpush1.msra.mxu0 0.0
    %1962 = vmatprep.mubr.f32.mxu0 0.0
    %1963 = vmatmul.mubr.f32.gmra.mrb[0].mxu0 %v1896
    %v1964 = vpop.f32.mrb[0].mxu0
    %v1965 = vadd.f32 0.0, %v1964
    %v1966 = vpop.f32.mrb[0].mxu0
    %1967 = vdwg.mxu0
    %1969 = vrot.lane.b32.xlu0 %v1892, 108
    %v1970 = vpop.permute.xlu0 %1969
    %v1971 = vsel %vm157, %v1970, 0
    %1973 = vmatprep.subr.mxu0 0.0
    %1974 = vmatpush1.msra.mxu0 %v145
    %1975 = vmatprep.subr.mxu0 0.0
    %1976 = vmatpush1.msra.mxu0 %v339
    %1977 = vmatprep.subr.mxu0 0.0
    %1978 = vmatpush1.msra.mxu0 0.0
    %1979 = vmatprep.subr.mxu0 0.0
    %1980 = vmatpush1.msra.mxu0 0.0
    %1981 = vmatprep.subr.mxu0 0.0
    %1982 = vmatpush1.msra.mxu0 0.0
    %1983 = vmatprep.subr.mxu0 0.0
    %1984 = vmatpush1.msra.mxu0 0.0
    %1985 = vmatprep.subr.mxu0 0.0
    %1986 = vmatpush1.msra.mxu0 0.0
    %1987 = vmatprep.subr.mxu0 0.0
    %1988 = vmatpush1.msra.mxu0 0.0
    %1989 = vmatprep.subr.mxu0 0.0
    %1990 = vmatpush1.msra.mxu0 0.0
    %1991 = vmatprep.subr.mxu0 0.0
    %1992 = vmatpush1.msra.mxu0 0.0
    %1993 = vmatprep.subr.mxu0 0.0
    %1994 = vmatpush1.msra.mxu0 0.0
    %1995 = vmatprep.subr.mxu0 0.0
    %1996 = vmatpush1.msra.mxu0 0.0
    %1997 = vmatprep.subr.mxu0 0.0
    %1998 = vmatpush1.msra.mxu0 0.0
    %1999 = vmatprep.subr.mxu0 0.0
    %2000 = vmatpush1.msra.mxu0 0.0
    %2001 = vmatprep.subr.mxu0 0.0
    %2002 = vmatpush1.msra.mxu0 0.0
    %2003 = vmatprep.subr.mxu0 0.0
    %2004 = vmatpush1.msra.mxu0 0.0
    %2005 = vmatprep.subr.mxu0 0.0
    %2006 = vmatpush1.msra.mxu0 0.0
    %2007 = vmatprep.subr.mxu0 0.0
    %2008 = vmatpush1.msra.mxu0 0.0
    %2009 = vmatprep.subr.mxu0 0.0
    %2010 = vmatpush1.msra.mxu0 0.0
    %2011 = vmatprep.subr.mxu0 0.0
    %2012 = vmatpush1.msra.mxu0 0.0
    %2013 = vmatprep.subr.mxu0 0.0
    %2014 = vmatpush1.msra.mxu0 0.0
    %2015 = vmatprep.subr.mxu0 0.0
    %2016 = vmatpush1.msra.mxu0 0.0
    %2017 = vmatprep.subr.mxu0 0.0
    %2018 = vmatpush1.msra.mxu0 0.0
    %2019 = vmatprep.subr.mxu0 0.0
    %2020 = vmatpush1.msra.mxu0 0.0
    %2021 = vmatprep.subr.mxu0 0.0
    %2022 = vmatpush1.msra.mxu0 0.0
    %2023 = vmatprep.subr.mxu0 0.0
    %2024 = vmatpush1.msra.mxu0 0.0
    %2025 = vmatprep.subr.mxu0 0.0
    %2026 = vmatpush1.msra.mxu0 0.0
    %2027 = vmatprep.subr.mxu0 0.0
    %2028 = vmatpush1.msra.mxu0 0.0
    %2029 = vmatprep.subr.mxu0 0.0
    %2030 = vmatpush1.msra.mxu0 0.0
    %2031 = vmatprep.subr.mxu0 0.0
    %2032 = vmatpush1.msra.mxu0 0.0
    %2033 = vmatprep.subr.mxu0 0.0
    %2034 = vmatpush1.msra.mxu0 0.0
    %2035 = vmatprep.subr.mxu0 0.0
    %2036 = vmatpush1.msra.mxu0 0.0
    %2037 = vmatprep.mubr.f32.mxu0 0.0
    %2038 = vmatmul.mubr.f32.gmra.mrb[0].mxu0 %v1971
    %v2039 = vpop.f32.mrb[0].mxu0
    %v2040 = vadd.f32 %v1965, %v2039
    %v2041 = vpop.f32.mrb[0].mxu0
    %2042 = vdwg.mxu0
    %v2043 = vadd.f32 %v2040, %v154
    %v2044 = vxor.u32 %v2043, 2147483648
    %v2045 = vmul.f32 %v2044, 1.442695
    %v2046 = vpow.pop %v2045
    %v2047 = vadd.f32 %v2046, 1.0
    %v2048 = vrcp.pop %v2047
    %v2049 = vmul.f32 1.0, %v2048
    %v2050 = vtanh.pop %v2043
    %v2051 = vmul.f32 %v2049, %v1789
    %2053 = vrot.lane.b32.xlu0 %v2050, 98
    %v2054 = vpop.permute.xlu0 %2053
    %v2056 = vmul.f32 %v2049, %v2054
    %2058 = vrot.lane.b32.xlu0 %v2056, 10
    %v2059 = vpop.permute.xlu0 %2058
    %v2061 = vadd.f32 %v2051, %v2059
    %v2062 = vtanh.pop %v2061
    %2064 = vrot.lane.b32.xlu0 %v2062, 10
    %v2065 = vpop.permute.xlu0 %2064
    %v2067 = vmul.f32 %v2049, %v2065
    %s2068 = scalar_lea.vmem [#allocation2], 14
    %v2069 = vld [vmem:[%s2068] sm:$0x3]
    %2070 = vmatprep.subr.mxu0 0.0
    %2071 = vmatpush1.msra.mxu0 %v143
    %2072 = vmatprep.subr.mxu0 0.0
    %2073 = vmatpush1.msra.mxu0 %v163
    %2074 = vmatprep.subr.mxu0 0.0
    %2075 = vmatpush1.msra.mxu0 0.0
    %2076 = vmatprep.subr.mxu0 0.0
    %2077 = vmatpush1.msra.mxu0 0.0
    %2078 = vmatprep.subr.mxu0 0.0
    %2079 = vmatpush1.msra.mxu0 0.0
    %2080 = vmatprep.subr.mxu0 0.0
    %2081 = vmatpush1.msra.mxu0 0.0
    %2082 = vmatprep.subr.mxu0 0.0
    %2083 = vmatpush1.msra.mxu0 0.0
    %2084 = vmatprep.subr.mxu0 0.0
    %2085 = vmatpush1.msra.mxu0 0.0
    %2086 = vmatprep.subr.mxu0 0.0
    %2087 = vmatpush1.msra.mxu0 0.0
    %2088 = vmatprep.subr.mxu0 0.0
    %2089 = vmatpush1.msra.mxu0 0.0
    %2090 = vmatprep.subr.mxu0 0.0
    %2091 = vmatpush1.msra.mxu0 0.0
    %2092 = vmatprep.subr.mxu0 0.0
    %2093 = vmatpush1.msra.mxu0 0.0
    %2094 = vmatprep.subr.mxu0 0.0
    %2095 = vmatpush1.msra.mxu0 0.0
    %2096 = vmatprep.subr.mxu0 0.0
    %2097 = vmatpush1.msra.mxu0 0.0
    %2098 = vmatprep.subr.mxu0 0.0
    %2099 = vmatpush1.msra.mxu0 0.0
    %2100 = vmatprep.subr.mxu0 0.0
    %2101 = vmatpush1.msra.mxu0 0.0
    %2102 = vmatprep.subr.mxu0 0.0
    %2103 = vmatpush1.msra.mxu0 0.0
    %2104 = vmatprep.subr.mxu0 0.0
    %2105 = vmatpush1.msra.mxu0 0.0
    %2106 = vmatprep.subr.mxu0 0.0
    %2107 = vmatpush1.msra.mxu0 0.0
    %2108 = vmatprep.subr.mxu0 0.0
    %2109 = vmatpush1.msra.mxu0 0.0
    %2110 = vmatprep.subr.mxu0 0.0
    %2111 = vmatpush1.msra.mxu0 0.0
    %2112 = vmatprep.subr.mxu0 0.0
    %2113 = vmatpush1.msra.mxu0 0.0
    %2114 = vmatprep.subr.mxu0 0.0
    %2115 = vmatpush1.msra.mxu0 0.0
    %2116 = vmatprep.subr.mxu0 0.0
    %2117 = vmatpush1.msra.mxu0 0.0
    %2118 = vmatprep.subr.mxu0 0.0
    %2119 = vmatpush1.msra.mxu0 0.0
    %2120 = vmatprep.subr.mxu0 0.0
    %2121 = vmatpush1.msra.mxu0 0.0
    %2122 = vmatprep.subr.mxu0 0.0
    %2123 = vmatpush1.msra.mxu0 0.0
    %2124 = vmatprep.subr.mxu0 0.0
    %2125 = vmatpush1.msra.mxu0 0.0
    %2126 = vmatprep.subr.mxu0 0.0
    %2127 = vmatpush1.msra.mxu0 0.0
    %2128 = vmatprep.subr.mxu0 0.0
    %2129 = vmatpush1.msra.mxu0 0.0
    %2130 = vmatprep.subr.mxu0 0.0
    %2131 = vmatpush1.msra.mxu0 0.0
    %2132 = vmatprep.subr.mxu0 0.0
    %2133 = vmatpush1.msra.mxu0 0.0
    %2134 = vmatprep.mubr.f32.mxu0 0.0
    %2135 = vmatmul.mubr.f32.gmra.mrb[0].mxu0 %v1971
    %v2136 = vpop.f32.mrb[0].mxu0
    %v2137 = vadd.f32 0.0, %v2136
    %v2138 = vpop.f32.mrb[0].mxu0
    %2139 = vdwg.mxu0
    %v2140 = vadd.f32 %v2069, %v2137
    %v2141 = vxor.u32 %v2140, 2147483648
    %v2142 = vmul.f32 %v2141, 1.442695
    %v2143 = vpow.pop %v2142
    %v2144 = vadd.f32 %v2143, 1.0
    %v2145 = vrcp.pop %v2144
    %v2146 = vmul.f32 1.0, %v2145
    %v2147 = vtanh.pop %v2140
    %v2148 = vmul.f32 %v2146, %v1886
    %2150 = vrot.lane.b32.xlu0 %v2147, 98
    %v2151 = vpop.permute.xlu0 %2150
    %v2153 = vmul.f32 %v2146, %v2151
    %2155 = vrot.lane.b32.xlu0 %v2153, 10
    %v2156 = vpop.permute.xlu0 %2155
    %v2158 = vadd.f32 %v2148, %v2156
    %v2159 = vtanh.pop %v2158
    %2161 = vrot.lane.b32.xlu0 %v2159, 10
    %v2162 = vpop.permute.xlu0 %2161
    %v2164 = vmul.f32 %v2146, %v2162
    %2166 = vrot.lane.b32.xlu0 %v2067, 108
    %v2167 = vpop.permute.xlu0 %2166
    %v2168 = vsel %vm157, %v2167, 0
    %2170 = vmatprep.subr.mxu0 0.0
    %2171 = vmatpush1.msra.mxu0 %v147
    %2172 = vmatprep.subr.mxu0 0.0
    %2173 = vmatpush1.msra.mxu0 %v261
    %2174 = vmatprep.subr.mxu0 0.0
    %2175 = vmatpush1.msra.mxu0 0.0
    %2176 = vmatprep.subr.mxu0 0.0
    %2177 = vmatpush1.msra.mxu0 0.0
    %2178 = vmatprep.subr.mxu0 0.0
    %2179 = vmatpush1.msra.mxu0 0.0
    %2180 = vmatprep.subr.mxu0 0.0
    %2181 = vmatpush1.msra.mxu0 0.0
    %2182 = vmatprep.subr.mxu0 0.0
    %2183 = vmatpush1.msra.mxu0 0.0
    %2184 = vmatprep.subr.mxu0 0.0
    %2185 = vmatpush1.msra.mxu0 0.0
    %2186 = vmatprep.subr.mxu0 0.0
    %2187 = vmatpush1.msra.mxu0 0.0
    %2188 = vmatprep.subr.mxu0 0.0
    %2189 = vmatpush1.msra.mxu0 0.0
    %2190 = vmatprep.subr.mxu0 0.0
    %2191 = vmatpush1.msra.mxu0 0.0
    %2192 = vmatprep.subr.mxu0 0.0
    %2193 = vmatpush1.msra.mxu0 0.0
    %2194 = vmatprep.subr.mxu0 0.0
    %2195 = vmatpush1.msra.mxu0 0.0
    %2196 = vmatprep.subr.mxu0 0.0
    %2197 = vmatpush1.msra.mxu0 0.0
    %2198 = vmatprep.subr.mxu0 0.0
    %2199 = vmatpush1.msra.mxu0 0.0
    %2200 = vmatprep.subr.mxu0 0.0
    %2201 = vmatpush1.msra.mxu0 0.0
    %2202 = vmatprep.subr.mxu0 0.0
    %2203 = vmatpush1.msra.mxu0 0.0
    %2204 = vmatprep.subr.mxu0 0.0
    %2205 = vmatpush1.msra.mxu0 0.0
    %2206 = vmatprep.subr.mxu0 0.0
    %2207 = vmatpush1.msra.mxu0 0.0
    %2208 = vmatprep.subr.mxu0 0.0
    %2209 = vmatpush1.msra.mxu0 0.0
    %2210 = vmatprep.subr.mxu0 0.0
    %2211 = vmatpush1.msra.mxu0 0.0
    %2212 = vmatprep.subr.mxu0 0.0
    %2213 = vmatpush1.msra.mxu0 0.0
    %2214 = vmatprep.subr.mxu0 0.0
    %2215 = vmatpush1.msra.mxu0 0.0
    %2216 = vmatprep.subr.mxu0 0.0
    %2217 = vmatpush1.msra.mxu0 0.0
    %2218 = vmatprep.subr.mxu0 0.0
    %2219 = vmatpush1.msra.mxu0 0.0
    %2220 = vmatprep.subr.mxu0 0.0
    %2221 = vmatpush1.msra.mxu0 0.0
    %2222 = vmatprep.subr.mxu0 0.0
    %2223 = vmatpush1.msra.mxu0 0.0
    %2224 = vmatprep.subr.mxu0 0.0
    %2225 = vmatpush1.msra.mxu0 0.0
    %2226 = vmatprep.subr.mxu0 0.0
    %2227 = vmatpush1.msra.mxu0 0.0
    %2228 = vmatprep.subr.mxu0 0.0
    %2229 = vmatpush1.msra.mxu0 0.0
    %2230 = vmatprep.subr.mxu0 0.0
    %2231 = vmatpush1.msra.mxu0 0.0
    %2232 = vmatprep.subr.mxu0 0.0
    %2233 = vmatpush1.msra.mxu0 0.0
    %2234 = vmatprep.mubr.f32.mxu0 0.0
    %2235 = vmatmul.mubr.f32.gmra.mrb[0].mxu0 %v2168
    %v2236 = vpop.f32.mrb[0].mxu0
    %v2237 = vadd.f32 0.0, %v2236
    %v2238 = vpop.f32.mrb[0].mxu0
    %2239 = vdwg.mxu0
    %2241 = vrot.lane.b32.xlu0 %v2164, 108
    %v2242 = vpop.permute.xlu0 %2241
    %v2243 = vsel %vm157, %v2242, 0
    %2245 = vmatprep.subr.mxu0 0.0
    %2246 = vmatpush1.msra.mxu0 %v145
    %2247 = vmatprep.subr.mxu0 0.0
    %2248 = vmatpush1.msra.mxu0 %v339
    %2249 = vmatprep.subr.mxu0 0.0
    %2250 = vmatpush1.msra.mxu0 0.0
    %2251 = vmatprep.subr.mxu0 0.0
    %2252 = vmatpush1.msra.mxu0 0.0
    %2253 = vmatprep.subr.mxu0 0.0
    %2254 = vmatpush1.msra.mxu0 0.0
    %2255 = vmatprep.subr.mxu0 0.0
    %2256 = vmatpush1.msra.mxu0 0.0
    %2257 = vmatprep.subr.mxu0 0.0
    %2258 = vmatpush1.msra.mxu0 0.0
    %2259 = vmatprep.subr.mxu0 0.0
    %2260 = vmatpush1.msra.mxu0 0.0
    %2261 = vmatprep.subr.mxu0 0.0
    %2262 = vmatpush1.msra.mxu0 0.0
    %2263 = vmatprep.subr.mxu0 0.0
    %2264 = vmatpush1.msra.mxu0 0.0
    %2265 = vmatprep.subr.mxu0 0.0
    %2266 = vmatpush1.msra.mxu0 0.0
    %2267 = vmatprep.subr.mxu0 0.0
    %2268 = vmatpush1.msra.mxu0 0.0
    %2269 = vmatprep.subr.mxu0 0.0
    %2270 = vmatpush1.msra.mxu0 0.0
    %2271 = vmatprep.subr.mxu0 0.0
    %2272 = vmatpush1.msra.mxu0 0.0
    %2273 = vmatprep.subr.mxu0 0.0
    %2274 = vmatpush1.msra.mxu0 0.0
    %2275 = vmatprep.subr.mxu0 0.0
    %2276 = vmatpush1.msra.mxu0 0.0
    %2277 = vmatprep.subr.mxu0 0.0
    %2278 = vmatpush1.msra.mxu0 0.0
    %2279 = vmatprep.subr.mxu0 0.0
    %2280 = vmatpush1.msra.mxu0 0.0
    %2281 = vmatprep.subr.mxu0 0.0
    %2282 = vmatpush1.msra.mxu0 0.0
    %2283 = vmatprep.subr.mxu0 0.0
    %2284 = vmatpush1.msra.mxu0 0.0
    %2285 = vmatprep.subr.mxu0 0.0
    %2286 = vmatpush1.msra.mxu0 0.0
    %2287 = vmatprep.subr.mxu0 0.0
    %2288 = vmatpush1.msra.mxu0 0.0
    %2289 = vmatprep.subr.mxu0 0.0
    %2290 = vmatpush1.msra.mxu0 0.0
    %2291 = vmatprep.subr.mxu0 0.0
    %2292 = vmatpush1.msra.mxu0 0.0
    %2293 = vmatprep.subr.mxu0 0.0
    %2294 = vmatpush1.msra.mxu0 0.0
    %2295 = vmatprep.subr.mxu0 0.0
    %2296 = vmatpush1.msra.mxu0 0.0
    %2297 = vmatprep.subr.mxu0 0.0
    %2298 = vmatpush1.msra.mxu0 0.0
    %2299 = vmatprep.subr.mxu0 0.0
    %2300 = vmatpush1.msra.mxu0 0.0
    %2301 = vmatprep.subr.mxu0 0.0
    %2302 = vmatpush1.msra.mxu0 0.0
    %2303 = vmatprep.subr.mxu0 0.0
    %2304 = vmatpush1.msra.mxu0 0.0
    %2305 = vmatprep.subr.mxu0 0.0
    %2306 = vmatpush1.msra.mxu0 0.0
    %2307 = vmatprep.subr.mxu0 0.0
    %2308 = vmatpush1.msra.mxu0 0.0
    %2309 = vmatprep.mubr.f32.mxu0 0.0
    %2310 = vmatmul.mubr.f32.gmra.mrb[0].mxu0 %v2243
    %v2311 = vpop.f32.mrb[0].mxu0
    %v2312 = vadd.f32 %v2237, %v2311
    %v2313 = vpop.f32.mrb[0].mxu0
    %2314 = vdwg.mxu0
    %v2315 = vadd.f32 %v2312, %v154
    %v2316 = vxor.u32 %v2315, 2147483648
    %v2317 = vmul.f32 %v2316, 1.442695
    %v2318 = vpow.pop %v2317
    %v2319 = vadd.f32 %v2318, 1.0
    %v2320 = vrcp.pop %v2319
    %v2321 = vmul.f32 1.0, %v2320
    %v2322 = vtanh.pop %v2315
    %v2323 = vmul.f32 %v2321, %v2061
    %2325 = vrot.lane.b32.xlu0 %v2322, 98
    %v2326 = vpop.permute.xlu0 %2325
    %v2328 = vmul.f32 %v2321, %v2326
    %2330 = vrot.lane.b32.xlu0 %v2328, 10
    %v2331 = vpop.permute.xlu0 %2330
    %v2333 = vadd.f32 %v2323, %v2331
    %v2334 = vtanh.pop %v2333
    %2336 = vrot.lane.b32.xlu0 %v2334, 10
    %v2337 = vpop.permute.xlu0 %2336
    %v2339 = vmul.f32 %v2321, %v2337
    %v2340 = vld [vmem:[%s7] sm:$0xff]
    %v2341 = vld [vmem:[%s7 + $0x8] sm:$0x3]
    %v2342 = vld [vmem:[%s8] sm:$0x1]
    %v2344 = vlaneseq
    %v2345 = vshrl.u32 %v2344, 7
    %v2346 = vsub.s32 0, %v2345
    %v2347 = vrot.slane %v2342, %v2346
    %2350 = vrot.lane.b32.xlu0 %v2339, 108
    %v2351 = vpop.permute.xlu0 %2350
    %v2352 = vsel %vm157, %v2351, 0
    %v2355 = vsel %vm161, %v2341, 0
    %2357 = vmatprep.subr.mxu0 0.0
    %2358 = vmatpush1.msra.mxu0 %v2340
    %2359 = vmatprep.subr.mxu0 0.0
    %2360 = vmatpush1.msra.mxu0 %v2355
    %2361 = vmatprep.subr.mxu0 0.0
    %2362 = vmatpush1.msra.mxu0 0.0
    %2363 = vmatprep.subr.mxu0 0.0
    %2364 = vmatpush1.msra.mxu0 0.0
    %2365 = vmatprep.subr.mxu0 0.0
    %2366 = vmatpush1.msra.mxu0 0.0
    %2367 = vmatprep.subr.mxu0 0.0
    %2368 = vmatpush1.msra.mxu0 0.0
    %2369 = vmatprep.subr.mxu0 0.0
    %2370 = vmatpush1.msra.mxu0 0.0
    %2371 = vmatprep.subr.mxu0 0.0
    %2372 = vmatpush1.msra.mxu0 0.0
    %2373 = vmatprep.subr.mxu0 0.0
    %2374 = vmatpush1.msra.mxu0 0.0
    %2375 = vmatprep.subr.mxu0 0.0
    %2376 = vmatpush1.msra.mxu0 0.0
    %2377 = vmatprep.subr.mxu0 0.0
    %2378 = vmatpush1.msra.mxu0 0.0
    %2379 = vmatprep.subr.mxu0 0.0
    %2380 = vmatpush1.msra.mxu0 0.0
    %2381 = vmatprep.subr.mxu0 0.0
    %2382 = vmatpush1.msra.mxu0 0.0
    %2383 = vmatprep.subr.mxu0 0.0
    %2384 = vmatpush1.msra.mxu0 0.0
    %2385 = vmatprep.subr.mxu0 0.0
    %2386 = vmatpush1.msra.mxu0 0.0
    %2387 = vmatprep.subr.mxu0 0.0
    %2388 = vmatpush1.msra.mxu0 0.0
    %2389 = vmatprep.subr.mxu0 0.0
    %2390 = vmatpush1.msra.mxu0 0.0
    %2391 = vmatprep.subr.mxu0 0.0
    %2392 = vmatpush1.msra.mxu0 0.0
    %2393 = vmatprep.subr.mxu0 0.0
    %2394 = vmatpush1.msra.mxu0 0.0
    %2395 = vmatprep.subr.mxu0 0.0
    %2396 = vmatpush1.msra.mxu0 0.0
    %2397 = vmatprep.subr.mxu0 0.0
    %2398 = vmatpush1.msra.mxu0 0.0
    %2399 = vmatprep.subr.mxu0 0.0
    %2400 = vmatpush1.msra.mxu0 0.0
    %2401 = vmatprep.subr.mxu0 0.0
    %2402 = vmatpush1.msra.mxu0 0.0
    %2403 = vmatprep.subr.mxu0 0.0
    %2404 = vmatpush1.msra.mxu0 0.0
    %2405 = vmatprep.subr.mxu0 0.0
    %2406 = vmatpush1.msra.mxu0 0.0
    %2407 = vmatprep.subr.mxu0 0.0
    %2408 = vmatpush1.msra.mxu0 0.0
    %2409 = vmatprep.subr.mxu0 0.0
    %2410 = vmatpush1.msra.mxu0 0.0
    %2411 = vmatprep.subr.mxu0 0.0
    %2412 = vmatpush1.msra.mxu0 0.0
    %2413 = vmatprep.subr.mxu0 0.0
    %2414 = vmatpush1.msra.mxu0 0.0
    %2415 = vmatprep.subr.mxu0 0.0
    %2416 = vmatpush1.msra.mxu0 0.0
    %2417 = vmatprep.subr.mxu0 0.0
    %2418 = vmatpush1.msra.mxu0 0.0
    %2419 = vmatprep.subr.mxu0 0.0
    %2420 = vmatpush1.msra.mxu0 0.0
    %2421 = vmatprep.mubr.f32.mxu0 0.0
    %2422 = vmatmul.mubr.f32.gmra.mrb[0].mxu0 %v2352
    %v2423 = vpop.f32.mrb[0].mxu0
    %v2424 = vadd.f32 %v2347, %v2423
    %v2425 = vpop.f32.mrb[0].mxu0
    %2426 = vdwg.mxu0
    %vm2427 = vcmask 9216
    %2428 = vst.msk [vmem:[#allocation6] sm:$0x3] %vm2427, %v2424
    // Predicated region
    $region42: #{tpu_custom_call.1} parent=1 // pred_check
      _
    $region43: #{tpu_custom_call.1} parent=1 // pred_check_branch
      %2430 = sbr.rel (0) target = $region45
    $region44: #{tpu_custom_call.1} parent=1 // pred_region
      %s2432 = ssub.s32 32, 32
      %2433 = vsyncadd [#allocation5], %s2432
      %s2435 = sshll.u32 [#allocation6], 4
      %s2436 = int_to_ptr.vmem [resolvable:$true] %s2435
      %2438 = dma.vmem_to_hbm [thread:$0]  %s2436, 32, %s9, [#allocation5]
    $region45: #{tpu_custom_call.1} parent=1 // pred_fallthru
      _
    // Predicated region
    $region46: #{tpu_custom_call.1} parent=1 // pred_check
      _
    $region47: #{tpu_custom_call.1} parent=1 // pred_check_branch
      %2440 = sbr.rel (0) target = $region49
    $region48: #{tpu_custom_call.1} parent=1 // pred_region
      %2441 = dma.done [#allocation5], 32
    $region49: #{tpu_custom_call.1} parent=1 // pred_fallthru
      _
    %2442 = vsyncpa [#allocation4], 1
    %2443 = vsyncpa [#allocation5], 1

</llo_original>
